<compile_context>
chip_gen: v5e
topology: v5e:2x2
jax: 0.10.0
libtpu: 0.0.40
codegen_flags: <defaults>
</compile_context>

<pallas_src>
import jax
import jax.numpy as jnp
from jax.experimental import pallas as pl
from jax.experimental.pallas import tpu as pltpu

# ---------------- problem sizes (small, deterministic) ----------------
N, H, W = 2, 16, 16
CIN, COUT = 4, 8          # cin != cout -> shortcut is a 1x1 conv
EPS = 1e-5

M = N * H * W             # 512 pixels
LANES = W * COUT          # 128: lane-dense activation width (col = x*COUT + c)
KTAP = W * CIN            # 64 : lane width of one conv1 im2col tap
K1 = 9 * KTAP             # 576: conv1 im2col width
K1P = 640                 # padded to a multiple of 128 for clean vector loads


# ---------------- Pallas kernel ----------------
def resblock_kernel(a1_ref, wbig_ref, w2blk_ref, gsum_ref,
                    b1_ref, g1_ref, be1_ref,
                    b2_ref, g2_ref, be2_ref, bs_ref,
                    out_ref,
                    hpad_ref):
    inv_m = 1.0 / float(M)
    gsum = gsum_ref[...]                                   # (128,128) f32, loaded once

    def batchnorm(y, gamma, beta):
        # single-pass batch stats: per-column sums, then fold the 16 lane groups
        # (columns with equal col%COUT) into per-channel stats via a tiny matmul.
        s = jnp.sum(y, axis=0, keepdims=True)              # (1,128)
        ss = jnp.sum(y * y, axis=0, keepdims=True)         # (1,128)
        mean = jnp.dot(s, gsum, preferred_element_type=jnp.float32) * inv_m
        ex2 = jnp.dot(ss, gsum, preferred_element_type=jnp.float32) * inv_m
        var = ex2 - mean * mean                            # biased variance
        return (y - mean) * jax.lax.rsqrt(var + EPS) * gamma + beta

    # ---- conv1 + 1x1 shortcut fused into ONE bf16 MXU matmul ----
    # (32, 640) @ (640, 256) -> cols [0:128] = conv1 pre-BN, cols [128:256] = shortcut
    y = jnp.dot(a1_ref[...], wbig_ref[...], preferred_element_type=jnp.float32)
    c1 = y[:, :LANES] + b1_ref[...]                        # (32,128) f32
    sc = y[:, LANES:] + bs_ref[...]                        # (32,128) f32

    # ---- BN1 -> ReLU (f32 elementwise) ----
    h = jnp.maximum(batchnorm(c1, g1_ref[...], be1_ref[...]), 0.0)

    # ---- stage h into the spatially padded scratch (lane-dense, halo-only zero) ----
    zrow = jnp.zeros((N, 1, (W + 2) * COUT), jnp.bfloat16)
    zcol = jnp.zeros((N, H + 2, COUT), jnp.bfloat16)
    hpad_ref[:, 0:1, :] = zrow
    hpad_ref[:, H + 1:H + 2, :] = zrow
    hpad_ref[:, :, 0:COUT] = zcol
    hpad_ref[:, :, (W + 1) * COUT:] = zcol
    hpad_ref[:, 1:H + 1, COUT:(W + 1) * COUT] = (
        h.reshape(N, H, LANES).astype(jnp.bfloat16))

    # ---- conv2: 9 lane-dense taps, each a (32,128)@(128,128) bf16 matmul ----
    # block-diagonal weights keep the result directly in the (N*H, W*COUT) layout;
    # the first tap initialises the accumulator (no zeros + adds).
    acc = None
    for t in range(9):
        dy, dx = t // 3, t % 3
        tap = hpad_ref[:, dy:dy + H, dx * COUT:dx * COUT + LANES].reshape(N * H, LANES)
        part = jnp.dot(tap, w2blk_ref[t], preferred_element_type=jnp.float32)
        acc = part if acc is None else acc + part
    acc = batchnorm(acc + b2_ref[...], g2_ref[...], be2_ref[...])

    # ---- residual add + ReLU, unmasked lane-dense (32,128) store ----
    out_ref[...] = jnp.maximum(acc + sc, 0.0)


# ---------------- wrapper (layout plumbing done in XLA) ----------------
def _block_diag(w):
    # (cin, cout) -> (W*cin, W*cout): one copy of w per x position on the diagonal
    return jnp.kron(jnp.eye(W, dtype=w.dtype), w)


def _tile_row(v):
    # per-channel (COUT,) vector -> (1, W*COUT), col j holds v[j % COUT]
    return jnp.tile(v.reshape(1, COUT), (1, W)).astype(jnp.float32)


def resblock_pallas(x_nchw, params):
    (w1, b1, g1, be1, w2, b2, g2, be2, ws, bs) = params   # PyTorch layouts
    x = jnp.transpose(x_nchw, (0, 2, 3, 1))               # NHWC
    w1h = jnp.transpose(w1, (2, 3, 1, 0))                 # (3,3,CIN,COUT)
    w2h = jnp.transpose(w2, (2, 3, 1, 0))                 # (3,3,COUT,COUT)
    wsm = jnp.transpose(ws.reshape(COUT, CIN), (1, 0))    # (CIN,COUT)

    # -- conv1 padding + im2col in the wrapper (lane-dense (N*H, 9*W*CIN)) --
    xp = jnp.pad(x, ((0, 0), (1, 1), (1, 1), (0, 0)))
    taps = [xp[:, dy:dy + H, dx:dx + W, :].reshape(N * H, KTAP)
            for dy in range(3) for dx in range(3)]
    a1 = jnp.concatenate(taps, axis=-1)                    # (32, 576)
    a1 = jnp.pad(a1, ((0, 0), (0, K1P - K1))).astype(jnp.bfloat16)  # (32, 640)

    # -- conv1 + shortcut weights, block-diagonal, pre-reshaped & bf16 --
    w1big = jnp.concatenate(
        [_block_diag(w1h[dy, dx]) for dy in range(3) for dx in range(3)], axis=0)
    wsbig = jnp.zeros((K1, LANES), jnp.float32)
    wsbig = wsbig.at[4 * KTAP:5 * KTAP, :].set(_block_diag(wsm))   # center tap = x
    wbig = jnp.concatenate([w1big, wsbig], axis=1)                  # (576, 256)
    wbig = jnp.pad(wbig, ((0, K1P - K1), (0, 0))).astype(jnp.bfloat16)

    w2blk = jnp.stack([_block_diag(w2h[dy, dx])
                       for dy in range(3) for dx in range(3)], axis=0)
    w2blk = w2blk.astype(jnp.bfloat16)                              # (9,128,128)

    # group-sum matrix for BN stats: G[i,j] = 1 iff i % COUT == j % COUT
    lane = jnp.arange(LANES)
    gsum = (lane[:, None] % COUT == lane[None, :] % COUT).astype(jnp.float32)

    b1t, g1t, be1t = _tile_row(b1), _tile_row(g1), _tile_row(be1)
    b2t, g2t, be2t = _tile_row(b2), _tile_row(g2), _tile_row(be2)
    bst = _tile_row(bs)

    inputs = (a1, wbig, w2blk, gsum, b1t, g1t, be1t, b2t, g2t, be2t, bst)

    def full_spec(a):
        return pl.BlockSpec(a.shape, lambda i, _n=a.ndim: (0,) * _n)

    out2d = pl.pallas_call(
        resblock_kernel,
        out_shape=jax.ShapeDtypeStruct((N * H, LANES), jnp.float32),
        grid=(1,),
        in_specs=[full_spec(a) for a in inputs],
        out_specs=pl.BlockSpec((N * H, LANES), lambda i: (0, 0)),
        scratch_shapes=[
            pltpu.VMEM((N, H + 2, (W + 2) * COUT), jnp.bfloat16),   # padded hidden
        ],
        compiler_params=pltpu.CompilerParams(dimension_semantics=("arbitrary",)),
    )(*inputs)

    # (N*H, W*COUT) -> NHWC -> NCHW
    return jnp.transpose(out2d.reshape(N, H, W, COUT), (0, 3, 1, 2))


# ---------------- pure-JAX reference (bf16 matmul operands, f32 accumulation) ----------------
def _conv_nhwc(x, w_hwio, b, padding):
    out = jax.lax.conv_general_dilated(
        x.astype(jnp.bfloat16), w_hwio.astype(jnp.bfloat16),
        window_strides=(1, 1), padding=padding,
        dimension_numbers=('NHWC', 'HWIO', 'NHWC'),
        preferred_element_type=jnp.float32)
    return out + b.reshape(1, 1, 1, -1)


def _bn_ref(x, gamma, beta):
    mean = jnp.mean(x, axis=(0, 1, 2), keepdims=True)
    var = jnp.mean((x - mean) ** 2, axis=(0, 1, 2), keepdims=True)
    return (x - mean) * jax.lax.rsqrt(var + EPS) * gamma.reshape(1, 1, 1, -1) \
        + beta.reshape(1, 1, 1, -1)


def resblock_ref(x_nchw, params):
    (w1, b1, g1, be1, w2, b2, g2, be2, ws, bs) = params
    x = jnp.transpose(x_nchw, (0, 2, 3, 1))
    w1h = jnp.transpose(w1, (2, 3, 1, 0))
    w2h = jnp.transpose(w2, (2, 3, 1, 0))
    wsh = jnp.transpose(ws, (2, 3, 1, 0))                  # (1,1,CIN,COUT)
    residual = _conv_nhwc(x, wsh, bs, 'VALID')
    h = jnp.maximum(_bn_ref(_conv_nhwc(x, w1h, b1, 'SAME'), g1, be1), 0.0)
    out = _bn_ref(_conv_nhwc(h, w2h, b2, 'SAME'), g2, be2)
    out = jnp.maximum(out + residual, 0.0)
    return jnp.transpose(out, (0, 3, 1, 2))


# ---------------- main ----------------
if __name__ == "__main__":
    key = jax.random.PRNGKey(0)
    ks = jax.random.split(key, 8)

    # PyTorch-layout inputs / parameters (synthetic, deterministic)
    x = jax.random.normal(ks[0], (N, CIN, H, W), jnp.float32)            # NCHW
    w1 = 0.1 * jax.random.normal(ks[1], (COUT, CIN, 3, 3), jnp.float32)  # OIHW
    b1 = 0.1 * jax.random.normal(ks[2], (COUT,), jnp.float32)
    g1 = 1.0 + 0.1 * jax.random.normal(ks[3], (COUT,), jnp.float32)
    be1 = 0.1 * jax.random.normal(ks[4], (COUT,), jnp.float32)
    w2 = 0.1 * jax.random.normal(ks[5], (COUT, COUT, 3, 3), jnp.float32)
    b2 = 0.05 * jnp.ones((COUT,), jnp.float32)
    g2 = 1.1 * jnp.ones((COUT,), jnp.float32)
    be2 = -0.05 * jnp.ones((COUT,), jnp.float32)
    ws = 0.1 * jax.random.normal(ks[6], (COUT, CIN, 1, 1), jnp.float32)
    bs = 0.1 * jax.random.normal(ks[7], (COUT,), jnp.float32)

    params = (w1, b1, g1, be1, w2, b2, g2, be2, ws, bs)

    out = jax.block_until_ready(resblock_pallas(x, params))
    ref = resblock_ref(x, params)

    assert out.shape == (N, COUT, H, W)
    max_diff = jnp.max(jnp.abs(out - ref))
    assert jnp.allclose(out, ref, atol=2e-3, rtol=2e-3), f"max abs diff {max_diff}"

    print("KERNEL_OK")
</pallas_src>

<mosaic_0001>
module attributes {stable_mosaic.version = 11 : i64} {
  func.func @resblock_kernel(%arg0: i32, %arg1: memref<32x640xbf16, #tpu.memory_space<vmem>>, %arg2: memref<640x256xbf16, #tpu.memory_space<vmem>>, %arg3: memref<9x128x128xbf16, #tpu.memory_space<vmem>>, %arg4: memref<128x128xf32, #tpu.memory_space<vmem>>, %arg5: memref<1x128xf32, #tpu.memory_space<vmem>>, %arg6: memref<1x128xf32, #tpu.memory_space<vmem>>, %arg7: memref<1x128xf32, #tpu.memory_space<vmem>>, %arg8: memref<1x128xf32, #tpu.memory_space<vmem>>, %arg9: memref<1x128xf32, #tpu.memory_space<vmem>>, %arg10: memref<1x128xf32, #tpu.memory_space<vmem>>, %arg11: memref<1x128xf32, #tpu.memory_space<vmem>>, %arg12: memref<32x128xf32, #tpu.memory_space<vmem>>, %arg13: memref<2x18x144xbf16, #tpu.memory_space<vmem>>) attributes {dimension_semantics = [#tpu.dimension_semantics<arbitrary>], iteration_bounds = array<i64: 1>, scalar_prefetch = 0 : i64, scratch_operands = 1 : i64, tpu.core_type = #tpu.core_type<tc>, window_params = [{pipeline_mode = #tpu.pipeline_mode<synchronous>, transform_indices = @transform_0, window_bounds = array<i64: 32, 640>}, {pipeline_mode = #tpu.pipeline_mode<synchronous>, transform_indices = @transform_1, window_bounds = array<i64: 640, 256>}, {pipeline_mode = #tpu.pipeline_mode<synchronous>, transform_indices = @transform_2, window_bounds = array<i64: 9, 128, 128>}, {pipeline_mode = #tpu.pipeline_mode<synchronous>, transform_indices = @transform_3, window_bounds = array<i64: 128, 128>}, {pipeline_mode = #tpu.pipeline_mode<synchronous>, transform_indices = @transform_4, window_bounds = array<i64: 1, 128>}, {pipeline_mode = #tpu.pipeline_mode<synchronous>, transform_indices = @transform_5, window_bounds = array<i64: 1, 128>}, {pipeline_mode = #tpu.pipeline_mode<synchronous>, transform_indices = @transform_6, window_bounds = array<i64: 1, 128>}, {pipeline_mode = #tpu.pipeline_mode<synchronous>, transform_indices = @transform_7, window_bounds = array<i64: 1, 128>}, {pipeline_mode = #tpu.pipeline_mode<synchronous>, transform_indices = @transform_8, window_bounds = array<i64: 1, 128>}, {pipeline_mode = #tpu.pipeline_mode<synchronous>, transform_indices = @transform_9, window_bounds = array<i64: 1, 128>}, {pipeline_mode = #tpu.pipeline_mode<synchronous>, transform_indices = @transform_10, window_bounds = array<i64: 1, 128>}, {pipeline_mode = #tpu.pipeline_mode<synchronous>, transform_indices = @transform_11, window_bounds = array<i64: 32, 128>}]} {
    %c0 = arith.constant 0 : index
    %c0_0 = arith.constant 0 : index
    %0 = vector.load %arg4[%c0, %c0_0] : memref<128x128xf32, #tpu.memory_space<vmem>>, vector<128x128xf32>
    %c0_1 = arith.constant 0 : index
    %c0_2 = arith.constant 0 : index
    %1 = vector.load %arg1[%c0_1, %c0_2] : memref<32x640xbf16, #tpu.memory_space<vmem>>, vector<32x640xbf16>
    %c0_3 = arith.constant 0 : index
    %c0_4 = arith.constant 0 : index
    %2 = vector.load %arg2[%c0_3, %c0_4] : memref<640x256xbf16, #tpu.memory_space<vmem>>, vector<640x256xbf16>
    %cst = arith.constant dense<0.000000e+00> : vector<32x256xf32>
    %3 = tpu.matmul %1, %2, %cst {dimension_numbers = #tpu.dot_dimension_numbers<[1], [0], [0], [1], [0, 0, 1, 1], [], []>} : vector<32x640xbf16>, vector<640x256xbf16>, vector<32x256xf32> -> vector<32x256xf32>
    %4 = vector.extract_strided_slice %3 {offsets = [0, 0], sizes = [32, 128], strides = [1, 1]} : vector<32x256xf32> to vector<32x128xf32>
    %c0_5 = arith.constant 0 : index
    %c0_6 = arith.constant 0 : index
    %5 = vector.load %arg5[%c0_5, %c0_6] : memref<1x128xf32, #tpu.memory_space<vmem>>, vector<1x128xf32>
    %6 = vector.broadcast %5 : vector<1x128xf32> to vector<32x128xf32>
    %7 = arith.addf %4, %6 : vector<32x128xf32>
    %8 = vector.extract_strided_slice %3 {offsets = [0, 128], sizes = [32, 128], strides = [1, 1]} : vector<32x256xf32> to vector<32x128xf32>
    %c0_7 = arith.constant 0 : index
    %c0_8 = arith.constant 0 : index
    %9 = vector.load %arg11[%c0_7, %c0_8] : memref<1x128xf32, #tpu.memory_space<vmem>>, vector<1x128xf32>
    %10 = vector.broadcast %9 : vector<1x128xf32> to vector<32x128xf32>
    %11 = arith.addf %8, %10 : vector<32x128xf32>
    %c0_9 = arith.constant 0 : index
    %c0_10 = arith.constant 0 : index
    %12 = vector.load %arg6[%c0_9, %c0_10] : memref<1x128xf32, #tpu.memory_space<vmem>>, vector<1x128xf32>
    %c0_11 = arith.constant 0 : index
    %c0_12 = arith.constant 0 : index
    %13 = vector.load %arg7[%c0_11, %c0_12] : memref<1x128xf32, #tpu.memory_space<vmem>>, vector<1x128xf32>
    %cst_13 = arith.constant dense<0.000000e+00> : vector<128xf32>
    %14 = vector.multi_reduction <add>, %7, %cst_13 [0] : vector<32x128xf32> to vector<128xf32>
    %15 = vector.shape_cast %14 : vector<128xf32> to vector<1x128xf32>
    %16 = arith.mulf %7, %7 : vector<32x128xf32>
    %cst_14 = arith.constant dense<0.000000e+00> : vector<128xf32>
    %17 = vector.multi_reduction <add>, %16, %cst_14 [0] : vector<32x128xf32> to vector<128xf32>
    %18 = vector.shape_cast %17 : vector<128xf32> to vector<1x128xf32>
    %cst_15 = arith.constant dense<0.000000e+00> : vector<1x128xf32>
    %19 = tpu.matmul %15, %0, %cst_15 {dimension_numbers = #tpu.dot_dimension_numbers<[1], [0], [0], [1], [0, 0, 1, 1], [], []>} : vector<1x128xf32>, vector<128x128xf32>, vector<1x128xf32> -> vector<1x128xf32>
    %cst_16 = arith.constant 0.001953125 : f32
    %20 = vector.broadcast %cst_16 : f32 to vector<1x128xf32>
    %21 = arith.mulf %19, %20 : vector<1x128xf32>
    %cst_17 = arith.constant dense<0.000000e+00> : vector<1x128xf32>
    %22 = tpu.matmul %18, %0, %cst_17 {dimension_numbers = #tpu.dot_dimension_numbers<[1], [0], [0], [1], [0, 0, 1, 1], [], []>} : vector<1x128xf32>, vector<128x128xf32>, vector<1x128xf32> -> vector<1x128xf32>
    %cst_18 = arith.constant 0.001953125 : f32
    %23 = vector.broadcast %cst_18 : f32 to vector<1x128xf32>
    %24 = arith.mulf %22, %23 : vector<1x128xf32>
    %25 = arith.mulf %21, %21 : vector<1x128xf32>
    %26 = arith.subf %24, %25 : vector<1x128xf32>
    %27 = vector.broadcast %21 : vector<1x128xf32> to vector<32x128xf32>
    %28 = arith.subf %7, %27 : vector<32x128xf32>
    %cst_19 = arith.constant 9.99999974E-6 : f32
    %29 = vector.broadcast %cst_19 : f32 to vector<1x128xf32>
    %30 = arith.addf %26, %29 : vector<1x128xf32>
    %31 = math.rsqrt %30 : vector<1x128xf32>
    %32 = vector.broadcast %31 : vector<1x128xf32> to vector<32x128xf32>
    %33 = arith.mulf %28, %32 : vector<32x128xf32>
    %34 = vector.broadcast %12 : vector<1x128xf32> to vector<32x128xf32>
    %35 = arith.mulf %33, %34 : vector<32x128xf32>
    %36 = vector.broadcast %13 : vector<1x128xf32> to vector<32x128xf32>
    %37 = arith.addf %35, %36 : vector<32x128xf32>
    %cst_20 = arith.constant 0.000000e+00 : f32
    %38 = vector.broadcast %cst_20 : f32 to vector<32x128xf32>
    %39 = arith.maximumf %37, %38 : vector<32x128xf32>
    %cst_21 = arith.constant 0.000000e+00 : bf16
    %40 = vector.broadcast %cst_21 : bf16 to vector<2x1x144xbf16>
    %cst_22 = arith.constant 0.000000e+00 : bf16
    %41 = vector.broadcast %cst_22 : bf16 to vector<2x18x8xbf16>
    %c0_23 = arith.constant 0 : index
    %c0_24 = arith.constant 0 : index
    %c0_25 = arith.constant 0 : index
    %42 = vector.load %arg13[%c0_23, %c0_24, %c0_25] : memref<2x18x144xbf16, #tpu.memory_space<vmem>>, vector<2x1x144xbf16>
    tpu.vector_store %arg13[%c0_23, %c0_24, %c0_25], %40 {strides = array<i32>} : memref<2x18x144xbf16, #tpu.memory_space<vmem>>, vector<2x1x144xbf16>,
    %c0_26 = arith.constant 0 : index
    %c17 = arith.constant 17 : index
    %c0_27 = arith.constant 0 : index
    %43 = vector.load %arg13[%c0_26, %c17, %c0_27] : memref<2x18x144xbf16, #tpu.memory_space<vmem>>, vector<2x1x144xbf16>
    tpu.vector_store %arg13[%c0_26, %c17, %c0_27], %40 {strides = array<i32>} : memref<2x18x144xbf16, #tpu.memory_space<vmem>>, vector<2x1x144xbf16>,
    %c0_28 = arith.constant 0 : index
    %c0_29 = arith.constant 0 : index
    %c0_30 = arith.constant 0 : index
    %44 = vector.load %arg13[%c0_28, %c0_29, %c0_30] : memref<2x18x144xbf16, #tpu.memory_space<vmem>>, vector<2x18x8xbf16>
    tpu.vector_store %arg13[%c0_28, %c0_29, %c0_30], %41 {strides = array<i32>} : memref<2x18x144xbf16, #tpu.memory_space<vmem>>, vector<2x18x8xbf16>,
    %c0_31 = arith.constant 0 : index
    %c0_32 = arith.constant 0 : index
    %c136 = arith.constant 136 : index
    %45 = vector.load %arg13[%c0_31, %c0_32, %c136] : memref<2x18x144xbf16, #tpu.memory_space<vmem>>, vector<2x18x8xbf16>
    tpu.vector_store %arg13[%c0_31, %c0_32, %c136], %41 {strides = array<i32>} : memref<2x18x144xbf16, #tpu.memory_space<vmem>>, vector<2x18x8xbf16>,
    %46 = vector.shape_cast %39 : vector<32x128xf32> to vector<2x16x128xf32>
    %47 = arith.truncf %46 : vector<2x16x128xf32> to vector<2x16x128xbf16>
    %c0_33 = arith.constant 0 : index
    %c1 = arith.constant 1 : index
    %c8 = arith.constant 8 : index
    %48 = vector.load %arg13[%c0_33, %c1, %c8] : memref<2x18x144xbf16, #tpu.memory_space<vmem>>, vector<2x16x128xbf16>
    tpu.vector_store %arg13[%c0_33, %c1, %c8], %47 {strides = array<i32>} : memref<2x18x144xbf16, #tpu.memory_space<vmem>>, vector<2x16x128xbf16>,
    %c0_34 = arith.constant 0 : index
    %c0_35 = arith.constant 0 : index
    %c0_36 = arith.constant 0 : index
    %49 = vector.load %arg13[%c0_34, %c0_35, %c0_36] : memref<2x18x144xbf16, #tpu.memory_space<vmem>>, vector<2x16x128xbf16>
    %50 = vector.shape_cast %49 : vector<2x16x128xbf16> to vector<32x128xbf16>
    %c0_37 = arith.constant 0 : index
    %c0_38 = arith.constant 0 : index
    %c0_39 = arith.constant 0 : index
    %51 = vector.load %arg3[%c0_37, %c0_38, %c0_39] : memref<9x128x128xbf16, #tpu.memory_space<vmem>>, vector<1x128x128xbf16>
    %52 = vector.shape_cast %51 : vector<1x128x128xbf16> to vector<128x128xbf16>
    %cst_40 = arith.constant dense<0.000000e+00> : vector<32x128xf32>
    %53 = tpu.matmul %50, %52, %cst_40 {dimension_numbers = #tpu.dot_dimension_numbers<[1], [0], [0], [1], [0, 0, 1, 1], [], []>} : vector<32x128xbf16>, vector<128x128xbf16>, vector<32x128xf32> -> vector<32x128xf32>
    %c0_41 = arith.constant 0 : index
    %c0_42 = arith.constant 0 : index
    %c8_43 = arith.constant 8 : index
    %54 = vector.load %arg13[%c0_41, %c0_42, %c8_43] : memref<2x18x144xbf16, #tpu.memory_space<vmem>>, vector<2x16x128xbf16>
    %55 = vector.shape_cast %54 : vector<2x16x128xbf16> to vector<32x128xbf16>
    %c1_44 = arith.constant 1 : index
    %c0_45 = arith.constant 0 : index
    %c0_46 = arith.constant 0 : index
    %56 = vector.load %arg3[%c1_44, %c0_45, %c0_46] : memref<9x128x128xbf16, #tpu.memory_space<vmem>>, vector<1x128x128xbf16>
    %57 = vector.shape_cast %56 : vector<1x128x128xbf16> to vector<128x128xbf16>
    %cst_47 = arith.constant dense<0.000000e+00> : vector<32x128xf32>
    %58 = tpu.matmul %55, %57, %cst_47 {dimension_numbers = #tpu.dot_dimension_numbers<[1], [0], [0], [1], [0, 0, 1, 1], [], []>} : vector<32x128xbf16>, vector<128x128xbf16>, vector<32x128xf32> -> vector<32x128xf32>
    %59 = arith.addf %53, %58 : vector<32x128xf32>
    %c0_48 = arith.constant 0 : index
    %c0_49 = arith.constant 0 : index
    %c16 = arith.constant 16 : index
    %60 = vector.load %arg13[%c0_48, %c0_49, %c16] : memref<2x18x144xbf16, #tpu.memory_space<vmem>>, vector<2x16x128xbf16>
    %61 = vector.shape_cast %60 : vector<2x16x128xbf16> to vector<32x128xbf16>
    %c2 = arith.constant 2 : index
    %c0_50 = arith.constant 0 : index
    %c0_51 = arith.constant 0 : index
    %62 = vector.load %arg3[%c2, %c0_50, %c0_51] : memref<9x128x128xbf16, #tpu.memory_space<vmem>>, vector<1x128x128xbf16>
    %63 = vector.shape_cast %62 : vector<1x128x128xbf16> to vector<128x128xbf16>
    %cst_52 = arith.constant dense<0.000000e+00> : vector<32x128xf32>
    %64 = tpu.matmul %61, %63, %cst_52 {dimension_numbers = #tpu.dot_dimension_numbers<[1], [0], [0], [1], [0, 0, 1, 1], [], []>} : vector<32x128xbf16>, vector<128x128xbf16>, vector<32x128xf32> -> vector<32x128xf32>
    %65 = arith.addf %59, %64 : vector<32x128xf32>
    %c0_53 = arith.constant 0 : index
    %c1_54 = arith.constant 1 : index
    %c0_55 = arith.constant 0 : index
    %66 = vector.load %arg13[%c0_53, %c1_54, %c0_55] : memref<2x18x144xbf16, #tpu.memory_space<vmem>>, vector<2x16x128xbf16>
    %67 = vector.shape_cast %66 : vector<2x16x128xbf16> to vector<32x128xbf16>
    %c3 = arith.constant 3 : index
    %c0_56 = arith.constant 0 : index
    %c0_57 = arith.constant 0 : index
    %68 = vector.load %arg3[%c3, %c0_56, %c0_57] : memref<9x128x128xbf16, #tpu.memory_space<vmem>>, vector<1x128x128xbf16>
    %69 = vector.shape_cast %68 : vector<1x128x128xbf16> to vector<128x128xbf16>
    %cst_58 = arith.constant dense<0.000000e+00> : vector<32x128xf32>
    %70 = tpu.matmul %67, %69, %cst_58 {dimension_numbers = #tpu.dot_dimension_numbers<[1], [0], [0], [1], [0, 0, 1, 1], [], []>} : vector<32x128xbf16>, vector<128x128xbf16>, vector<32x128xf32> -> vector<32x128xf32>
    %71 = arith.addf %65, %70 : vector<32x128xf32>
    %c0_59 = arith.constant 0 : index
    %c1_60 = arith.constant 1 : index
    %c8_61 = arith.constant 8 : index
    %72 = vector.load %arg13[%c0_59, %c1_60, %c8_61] : memref<2x18x144xbf16, #tpu.memory_space<vmem>>, vector<2x16x128xbf16>
    %73 = vector.shape_cast %72 : vector<2x16x128xbf16> to vector<32x128xbf16>
    %c4 = arith.constant 4 : index
    %c0_62 = arith.constant 0 : index
    %c0_63 = arith.constant 0 : index
    %74 = vector.load %arg3[%c4, %c0_62, %c0_63] : memref<9x128x128xbf16, #tpu.memory_space<vmem>>, vector<1x128x128xbf16>
    %75 = vector.shape_cast %74 : vector<1x128x128xbf16> to vector<128x128xbf16>
    %cst_64 = arith.constant dense<0.000000e+00> : vector<32x128xf32>
    %76 = tpu.matmul %73, %75, %cst_64 {dimension_numbers = #tpu.dot_dimension_numbers<[1], [0], [0], [1], [0, 0, 1, 1], [], []>} : vector<32x128xbf16>, vector<128x128xbf16>, vector<32x128xf32> -> vector<32x128xf32>
    %77 = arith.addf %71, %76 : vector<32x128xf32>
    %c0_65 = arith.constant 0 : index
    %c1_66 = arith.constant 1 : index
    %c16_67 = arith.constant 16 : index
    %78 = vector.load %arg13[%c0_65, %c1_66, %c16_67] : memref<2x18x144xbf16, #tpu.memory_space<vmem>>, vector<2x16x128xbf16>
    %79 = vector.shape_cast %78 : vector<2x16x128xbf16> to vector<32x128xbf16>
    %c5 = arith.constant 5 : index
    %c0_68 = arith.constant 0 : index
    %c0_69 = arith.constant 0 : index
    %80 = vector.load %arg3[%c5, %c0_68, %c0_69] : memref<9x128x128xbf16, #tpu.memory_space<vmem>>, vector<1x128x128xbf16>
    %81 = vector.shape_cast %80 : vector<1x128x128xbf16> to vector<128x128xbf16>
    %cst_70 = arith.constant dense<0.000000e+00> : vector<32x128xf32>
    %82 = tpu.matmul %79, %81, %cst_70 {dimension_numbers = #tpu.dot_dimension_numbers<[1], [0], [0], [1], [0, 0, 1, 1], [], []>} : vector<32x128xbf16>, vector<128x128xbf16>, vector<32x128xf32> -> vector<32x128xf32>
    %83 = arith.addf %77, %82 : vector<32x128xf32>
    %c0_71 = arith.constant 0 : index
    %c2_72 = arith.constant 2 : index
    %c0_73 = arith.constant 0 : index
    %84 = vector.load %arg13[%c0_71, %c2_72, %c0_73] : memref<2x18x144xbf16, #tpu.memory_space<vmem>>, vector<2x16x128xbf16>
    %85 = vector.shape_cast %84 : vector<2x16x128xbf16> to vector<32x128xbf16>
    %c6 = arith.constant 6 : index
    %c0_74 = arith.constant 0 : index
    %c0_75 = arith.constant 0 : index
    %86 = vector.load %arg3[%c6, %c0_74, %c0_75] : memref<9x128x128xbf16, #tpu.memory_space<vmem>>, vector<1x128x128xbf16>
    %87 = vector.shape_cast %86 : vector<1x128x128xbf16> to vector<128x128xbf16>
    %cst_76 = arith.constant dense<0.000000e+00> : vector<32x128xf32>
    %88 = tpu.matmul %85, %87, %cst_76 {dimension_numbers = #tpu.dot_dimension_numbers<[1], [0], [0], [1], [0, 0, 1, 1], [], []>} : vector<32x128xbf16>, vector<128x128xbf16>, vector<32x128xf32> -> vector<32x128xf32>
    %89 = arith.addf %83, %88 : vector<32x128xf32>
    %c0_77 = arith.constant 0 : index
    %c2_78 = arith.constant 2 : index
    %c8_79 = arith.constant 8 : index
    %90 = vector.load %arg13[%c0_77, %c2_78, %c8_79] : memref<2x18x144xbf16, #tpu.memory_space<vmem>>, vector<2x16x128xbf16>
    %91 = vector.shape_cast %90 : vector<2x16x128xbf16> to vector<32x128xbf16>
    %c7 = arith.constant 7 : index
    %c0_80 = arith.constant 0 : index
    %c0_81 = arith.constant 0 : index
    %92 = vector.load %arg3[%c7, %c0_80, %c0_81] : memref<9x128x128xbf16, #tpu.memory_space<vmem>>, vector<1x128x128xbf16>
    %93 = vector.shape_cast %92 : vector<1x128x128xbf16> to vector<128x128xbf16>
    %cst_82 = arith.constant dense<0.000000e+00> : vector<32x128xf32>
    %94 = tpu.matmul %91, %93, %cst_82 {dimension_numbers = #tpu.dot_dimension_numbers<[1], [0], [0], [1], [0, 0, 1, 1], [], []>} : vector<32x128xbf16>, vector<128x128xbf16>, vector<32x128xf32> -> vector<32x128xf32>
    %95 = arith.addf %89, %94 : vector<32x128xf32>
    %c0_83 = arith.constant 0 : index
    %c2_84 = arith.constant 2 : index
    %c16_85 = arith.constant 16 : index
    %96 = vector.load %arg13[%c0_83, %c2_84, %c16_85] : memref<2x18x144xbf16, #tpu.memory_space<vmem>>, vector<2x16x128xbf16>
    %97 = vector.shape_cast %96 : vector<2x16x128xbf16> to vector<32x128xbf16>
    %c8_86 = arith.constant 8 : index
    %c0_87 = arith.constant 0 : index
    %c0_88 = arith.constant 0 : index
    %98 = vector.load %arg3[%c8_86, %c0_87, %c0_88] : memref<9x128x128xbf16, #tpu.memory_space<vmem>>, vector<1x128x128xbf16>
    %99 = vector.shape_cast %98 : vector<1x128x128xbf16> to vector<128x128xbf16>
    %cst_89 = arith.constant dense<0.000000e+00> : vector<32x128xf32>
    %100 = tpu.matmul %97, %99, %cst_89 {dimension_numbers = #tpu.dot_dimension_numbers<[1], [0], [0], [1], [0, 0, 1, 1], [], []>} : vector<32x128xbf16>, vector<128x128xbf16>, vector<32x128xf32> -> vector<32x128xf32>
    %101 = arith.addf %95, %100 : vector<32x128xf32>
    %c0_90 = arith.constant 0 : index
    %c0_91 = arith.constant 0 : index
    %102 = vector.load %arg8[%c0_90, %c0_91] : memref<1x128xf32, #tpu.memory_space<vmem>>, vector<1x128xf32>
    %103 = vector.broadcast %102 : vector<1x128xf32> to vector<32x128xf32>
    %104 = arith.addf %101, %103 : vector<32x128xf32>
    %c0_92 = arith.constant 0 : index
    %c0_93 = arith.constant 0 : index
    %105 = vector.load %arg9[%c0_92, %c0_93] : memref<1x128xf32, #tpu.memory_space<vmem>>, vector<1x128xf32>
    %c0_94 = arith.constant 0 : index
    %c0_95 = arith.constant 0 : index
    %106 = vector.load %arg10[%c0_94, %c0_95] : memref<1x128xf32, #tpu.memory_space<vmem>>, vector<1x128xf32>
    %cst_96 = arith.constant dense<0.000000e+00> : vector<128xf32>
    %107 = vector.multi_reduction <add>, %104, %cst_96 [0] : vector<32x128xf32> to vector<128xf32>
    %108 = vector.shape_cast %107 : vector<128xf32> to vector<1x128xf32>
    %109 = arith.mulf %104, %104 : vector<32x128xf32>
    %cst_97 = arith.constant dense<0.000000e+00> : vector<128xf32>
    %110 = vector.multi_reduction <add>, %109, %cst_97 [0] : vector<32x128xf32> to vector<128xf32>
    %111 = vector.shape_cast %110 : vector<128xf32> to vector<1x128xf32>
    %cst_98 = arith.constant dense<0.000000e+00> : vector<1x128xf32>
    %112 = tpu.matmul %108, %0, %cst_98 {dimension_numbers = #tpu.dot_dimension_numbers<[1], [0], [0], [1], [0, 0, 1, 1], [], []>} : vector<1x128xf32>, vector<128x128xf32>, vector<1x128xf32> -> vector<1x128xf32>
    %cst_99 = arith.constant 0.001953125 : f32
    %113 = vector.broadcast %cst_99 : f32 to vector<1x128xf32>
    %114 = arith.mulf %112, %113 : vector<1x128xf32>
    %cst_100 = arith.constant dense<0.000000e+00> : vector<1x128xf32>
    %115 = tpu.matmul %111, %0, %cst_100 {dimension_numbers = #tpu.dot_dimension_numbers<[1], [0], [0], [1], [0, 0, 1, 1], [], []>} : vector<1x128xf32>, vector<128x128xf32>, vector<1x128xf32> -> vector<1x128xf32>
    %cst_101 = arith.constant 0.001953125 : f32
    %116 = vector.broadcast %cst_101 : f32 to vector<1x128xf32>
    %117 = arith.mulf %115, %116 : vector<1x128xf32>
    %118 = arith.mulf %114, %114 : vector<1x128xf32>
    %119 = arith.subf %117, %118 : vector<1x128xf32>
    %120 = vector.broadcast %114 : vector<1x128xf32> to vector<32x128xf32>
    %121 = arith.subf %104, %120 : vector<32x128xf32>
    %cst_102 = arith.constant 9.99999974E-6 : f32
    %122 = vector.broadcast %cst_102 : f32 to vector<1x128xf32>
    %123 = arith.addf %119, %122 : vector<1x128xf32>
    %124 = math.rsqrt %123 : vector<1x128xf32>
    %125 = vector.broadcast %124 : vector<1x128xf32> to vector<32x128xf32>
    %126 = arith.mulf %121, %125 : vector<32x128xf32>
    %127 = vector.broadcast %105 : vector<1x128xf32> to vector<32x128xf32>
    %128 = arith.mulf %126, %127 : vector<32x128xf32>
    %129 = vector.broadcast %106 : vector<1x128xf32> to vector<32x128xf32>
    %130 = arith.addf %128, %129 : vector<32x128xf32>
    %131 = arith.addf %130, %11 : vector<32x128xf32>
    %cst_103 = arith.constant 0.000000e+00 : f32
    %132 = vector.broadcast %cst_103 : f32 to vector<32x128xf32>
    %133 = arith.maximumf %131, %132 : vector<32x128xf32>
    %c0_104 = arith.constant 0 : index
    %c0_105 = arith.constant 0 : index
    %134 = vector.load %arg12[%c0_104, %c0_105] : memref<32x128xf32, #tpu.memory_space<vmem>>, vector<32x128xf32>
    tpu.vector_store %arg12[%c0_104, %c0_105], %133 {strides = array<i32>} : memref<32x128xf32, #tpu.memory_space<vmem>>, vector<32x128xf32>,
    return
  }
  func.func @transform_0(%arg0: i32) -> (i32, i32) {
    %c0_i32 = arith.constant 0 : i32
    %c0_i32_0 = arith.constant 0 : i32
    %c0_i32_1 = arith.constant 0 : i32
    return %c0_i32, %c0_i32_0 : i32, i32
  }
  func.func @transform_1(%arg0: i32) -> (i32, i32) {
    %c0_i32 = arith.constant 0 : i32
    %c0_i32_0 = arith.constant 0 : i32
    %c0_i32_1 = arith.constant 0 : i32
    return %c0_i32, %c0_i32_0 : i32, i32
  }
  func.func @transform_2(%arg0: i32) -> (i32, i32, i32) {
    %c0_i32 = arith.constant 0 : i32
    %c0_i32_0 = arith.constant 0 : i32
    %c0_i32_1 = arith.constant 0 : i32
    %c0_i32_2 = arith.constant 0 : i32
    return %c0_i32, %c0_i32_0, %c0_i32_1 : i32, i32, i32
  }
  func.func @transform_3(%arg0: i32) -> (i32, i32) {
    %c0_i32 = arith.constant 0 : i32
    %c0_i32_0 = arith.constant 0 : i32
    %c0_i32_1 = arith.constant 0 : i32
    return %c0_i32, %c0_i32_0 : i32, i32
  }
  func.func @transform_4(%arg0: i32) -> (i32, i32) {
    %c0_i32 = arith.constant 0 : i32
    %c0_i32_0 = arith.constant 0 : i32
    %c0_i32_1 = arith.constant 0 : i32
    return %c0_i32, %c0_i32_0 : i32, i32
  }
  func.func @transform_5(%arg0: i32) -> (i32, i32) {
    %c0_i32 = arith.constant 0 : i32
    %c0_i32_0 = arith.constant 0 : i32
    %c0_i32_1 = arith.constant 0 : i32
    return %c0_i32, %c0_i32_0 : i32, i32
  }
  func.func @transform_6(%arg0: i32) -> (i32, i32) {
    %c0_i32 = arith.constant 0 : i32
    %c0_i32_0 = arith.constant 0 : i32
    %c0_i32_1 = arith.constant 0 : i32
    return %c0_i32, %c0_i32_0 : i32, i32
  }
  func.func @transform_7(%arg0: i32) -> (i32, i32) {
    %c0_i32 = arith.constant 0 : i32
    %c0_i32_0 = arith.constant 0 : i32
    %c0_i32_1 = arith.constant 0 : i32
    return %c0_i32, %c0_i32_0 : i32, i32
  }
  func.func @transform_8(%arg0: i32) -> (i32, i32) {
    %c0_i32 = arith.constant 0 : i32
    %c0_i32_0 = arith.constant 0 : i32
    %c0_i32_1 = arith.constant 0 : i32
    return %c0_i32, %c0_i32_0 : i32, i32
  }
  func.func @transform_9(%arg0: i32) -> (i32, i32) {
    %c0_i32 = arith.constant 0 : i32
    %c0_i32_0 = arith.constant 0 : i32
    %c0_i32_1 = arith.constant 0 : i32
    return %c0_i32, %c0_i32_0 : i32, i32
  }
  func.func @transform_10(%arg0: i32) -> (i32, i32) {
    %c0_i32 = arith.constant 0 : i32
    %c0_i32_0 = arith.constant 0 : i32
    %c0_i32_1 = arith.constant 0 : i32
    return %c0_i32, %c0_i32_0 : i32, i32
  }
  func.func @transform_11(%arg0: i32) -> (i32, i32) {
    %c0_i32 = arith.constant 0 : i32
    %c0_i32_0 = arith.constant 0 : i32
    %c0_i32_1 = arith.constant 0 : i32
    return %c0_i32, %c0_i32_0 : i32, i32
  }
}

</mosaic_0001>

<llo_original>
// kernel: tpu_custom_call.1
$region0: #{tpu_custom_call.1}
  #allocation0 [shape = 'u32[]', space=smem, size = 0x4, offset = 0x4, fixed_abs, tag = 'smem constant byte address 0x4 - core index']
  #allocation1 [shape = 'u32[72,128]{1,0:T(1,128)}', space=vmem, size = 0x9000, scoped, tag = 'internal scratch']
  #allocation2 [shape = 'bf16[2,18,144]{2,1,0:T(8,128)(2,1)}', space=vmem, size = 0x6000, scoped, tag = 'scratch operand']
  %s0 = inlined_call_operand.hbm [shape: bf16[32,640], index: 0, kind: input, shape index: {}]
  %s1 = inlined_call_operand.hbm [shape: bf16[640,256], index: 1, kind: input, shape index: {}]
  %s2 = inlined_call_operand.hbm [shape: bf16[9,128,128], index: 2, kind: input, shape index: {}]
  %s3 = inlined_call_operand.hbm [shape: f32[128,128], index: 3, kind: input, shape index: {}]
  %s4 = inlined_call_operand.vmem [shape: f32[1,128], index: 4, kind: input, shape index: {}]
  %s5 = inlined_call_operand.vmem [shape: f32[1,128], index: 5, kind: input, shape index: {}]
  %s6 = inlined_call_operand.vmem [shape: f32[1,128], index: 6, kind: input, shape index: {}]
  %s7 = inlined_call_operand.vmem [shape: f32[1,128], index: 7, kind: input, shape index: {}]
  %s8 = inlined_call_operand.vmem [shape: f32[1,128], index: 8, kind: input, shape index: {}]
  %s9 = inlined_call_operand.vmem [shape: f32[1,128], index: 9, kind: input, shape index: {}]
  %s10 = inlined_call_operand.vmem [shape: f32[1,128], index: 10, kind: input, shape index: {}]
  %s11 = inlined_call_operand.hbm [shape: f32[32,128], index: 11, kind: output, shape index: {}]
  %s12 = sld [smem:[#allocation0]]
  $region70: #{tpu_custom_call.1} parent=0
    _
  %s14 = ssub.s32 1, %s12
  %s15 = scalar_select 0, %s14, %s12
  $region1: #{tpu_custom_call.1} parent=0
    #allocation3 [shape = 'u8[40960]{0}', space=vmem, size = 0xa000, scoped, tag = 'input window, operand 0, single buffered']
    #allocation4 [shape = 's32[1]{0}', space=sflag, size = 0x4, scoped, tag = 'scoped memory for tpu_custom_call.1']
    #allocation5 [shape = 's32[1]{0}', space=sflag, size = 0x4, scoped, tag = 'scoped memory for tpu_custom_call.1']
    #allocation6 [shape = 'u8[327680]{0}', space=vmem, size = 0x50000, scoped, tag = 'input window, operand 1, single buffered']
    #allocation7 [shape = 's32[1]{0}', space=sflag, size = 0x4, scoped, tag = 'scoped memory for tpu_custom_call.1']
    #allocation8 [shape = 'u8[294912]{0}', space=vmem, size = 0x48000, scoped, tag = 'input window, operand 2, single buffered']
    #allocation9 [shape = 'u8[65536]{0}', space=vmem, size = 0x10000, scoped, tag = 'input window, operand 3, single buffered']
    #allocation10 [shape = 's32[1]{0}', space=sflag, size = 0x4, scoped, tag = 'scoped memory for tpu_custom_call.1']
    #allocation11 [shape = 'u8[16384]{0}', space=vmem, size = 0x4000, scoped, tag = 'output window, operand 0, single buffered']
    %16 = vsyncpa [#allocation4], 0
    %17 = vsyncpa [#allocation7], 0
    %18 = vsyncpa [#allocation10], 0
    %19 = vsyncpa [#allocation5], 0
    // Predicated region
    $region2: #{tpu_custom_call.1} parent=1 // pred_check
      _
    $region3: #{tpu_custom_call.1} parent=1 // pred_check_branch
      %21 = sbr.rel (0) target = $region5
    $region4: #{tpu_custom_call.1} parent=1 // pred_region
      %23 = vsyncadd [#allocation4], 0
      %s24 = sshll.u32 %s0, 4
      %s25 = int_to_ptr.hbm [resolvable:$true] %s24
      %s26 = sshll.u32 [#allocation3], 4
      %s27 = int_to_ptr.vmem [resolvable:$true] %s26
      %32 = dma.hbm_to_vmem [thread:$0]  %s25, 1280, %s27, [#allocation4], 320, 320, 20
    $region5: #{tpu_custom_call.1} parent=1 // pred_fallthru
      _
    // Predicated region
    $region6: #{tpu_custom_call.1} parent=1 // pred_check
      _
    $region7: #{tpu_custom_call.1} parent=1 // pred_check_branch
      %34 = sbr.rel (0) target = $region9
    $region8: #{tpu_custom_call.1} parent=1 // pred_region
      %36 = vsyncadd [#allocation7], 0
      %s37 = sshll.u32 %s1, 4
      %s38 = int_to_ptr.hbm [resolvable:$true] %s37
      %s39 = sshll.u32 [#allocation6], 4
      %s40 = int_to_ptr.vmem [resolvable:$true] %s39
      %45 = dma.hbm_to_vmem [thread:$0]  %s38, 10240, %s40, [#allocation7], 128, 128, 8
    $region9: #{tpu_custom_call.1} parent=1 // pred_fallthru
      _
    // Predicated region
    $region10: #{tpu_custom_call.1} parent=1 // pred_check
      _
    $region11: #{tpu_custom_call.1} parent=1 // pred_check_branch
      %47 = sbr.rel (0) target = $region13
    $region12: #{tpu_custom_call.1} parent=1 // pred_region
      %49 = vsyncadd [#allocation7], 0
      %s50 = sshll.u32 %s2, 4
      %s51 = int_to_ptr.hbm [resolvable:$true] %s50
      %s52 = sshll.u32 [#allocation8], 4
      %s53 = int_to_ptr.vmem [resolvable:$true] %s52
      %58 = dma.hbm_to_vmem [thread:$0]  %s51, 9216, %s53, [#allocation7], 64, 64, 4
    $region13: #{tpu_custom_call.1} parent=1 // pred_fallthru
      _
    // Predicated region
    $region14: #{tpu_custom_call.1} parent=1 // pred_check
      _
    $region15: #{tpu_custom_call.1} parent=1 // pred_check_branch
      %60 = sbr.rel (0) target = $region17
    $region16: #{tpu_custom_call.1} parent=1 // pred_region
      %62 = vsyncadd [#allocation10], 0
      %s63 = sshll.u32 %s3, 4
      %s64 = int_to_ptr.hbm [resolvable:$true] %s63
      %s65 = sshll.u32 [#allocation9], 4
      %s66 = int_to_ptr.vmem [resolvable:$true] %s65
      %71 = dma.hbm_to_vmem [thread:$0]  %s64, 2048, %s66, [#allocation10], 128, 128, 8
    $region17: #{tpu_custom_call.1} parent=1 // pred_fallthru
      _
    // Predicated region
    $region18: #{tpu_custom_call.1} parent=1 // pred_check
      _
    $region19: #{tpu_custom_call.1} parent=1 // pred_check_branch
      %73 = sbr.rel (0) target = $region21
    $region20: #{tpu_custom_call.1} parent=1 // pred_region
      _
    $region21: #{tpu_custom_call.1} parent=1 // pred_fallthru
      _
    // Predicated region
    $region22: #{tpu_custom_call.1} parent=1 // pred_check
      _
    $region23: #{tpu_custom_call.1} parent=1 // pred_check_branch
      %75 = sbr.rel (0) target = $region25
    $region24: #{tpu_custom_call.1} parent=1 // pred_region
      _
    $region25: #{tpu_custom_call.1} parent=1 // pred_fallthru
      _
    // Predicated region
    $region26: #{tpu_custom_call.1} parent=1 // pred_check
      _
    $region27: #{tpu_custom_call.1} parent=1 // pred_check_branch
      %77 = sbr.rel (0) target = $region29
    $region28: #{tpu_custom_call.1} parent=1 // pred_region
      _
    $region29: #{tpu_custom_call.1} parent=1 // pred_fallthru
      _
    // Predicated region
    $region30: #{tpu_custom_call.1} parent=1 // pred_check
      _
    $region31: #{tpu_custom_call.1} parent=1 // pred_check_branch
      %79 = sbr.rel (0) target = $region33
    $region32: #{tpu_custom_call.1} parent=1 // pred_region
      _
    $region33: #{tpu_custom_call.1} parent=1 // pred_fallthru
      _
    // Predicated region
    $region34: #{tpu_custom_call.1} parent=1 // pred_check
      _
    $region35: #{tpu_custom_call.1} parent=1 // pred_check_branch
      %81 = sbr.rel (0) target = $region37
    $region36: #{tpu_custom_call.1} parent=1 // pred_region
      _
    $region37: #{tpu_custom_call.1} parent=1 // pred_fallthru
      _
    // Predicated region
    $region38: #{tpu_custom_call.1} parent=1 // pred_check
      _
    $region39: #{tpu_custom_call.1} parent=1 // pred_check_branch
      %83 = sbr.rel (0) target = $region41
    $region40: #{tpu_custom_call.1} parent=1 // pred_region
      _
    $region41: #{tpu_custom_call.1} parent=1 // pred_fallthru
      _
    // Predicated region
    $region42: #{tpu_custom_call.1} parent=1 // pred_check
      _
    $region43: #{tpu_custom_call.1} parent=1 // pred_check_branch
      %85 = sbr.rel (0) target = $region45
    $region44: #{tpu_custom_call.1} parent=1 // pred_region
      _
    $region45: #{tpu_custom_call.1} parent=1 // pred_fallthru
      _
    // Predicated region
    $region46: #{tpu_custom_call.1} parent=1 // pred_check
      _
    $region47: #{tpu_custom_call.1} parent=1 // pred_check_branch
      %87 = sbr.rel (0) target = $region49
    $region48: #{tpu_custom_call.1} parent=1 // pred_region
      %89 = dma.done [#allocation4], 1280
    $region49: #{tpu_custom_call.1} parent=1 // pred_fallthru
      _
    // Predicated region
    $region50: #{tpu_custom_call.1} parent=1 // pred_check
      _
    $region51: #{tpu_custom_call.1} parent=1 // pred_check_branch
      %91 = sbr.rel (0) target = $region53
    $region52: #{tpu_custom_call.1} parent=1 // pred_region
      %93 = dma.done [#allocation7], 10240
    $region53: #{tpu_custom_call.1} parent=1 // pred_fallthru
      _
    // Predicated region
    $region54: #{tpu_custom_call.1} parent=1 // pred_check
      _
    $region55: #{tpu_custom_call.1} parent=1 // pred_check_branch
      %95 = sbr.rel (0) target = $region57
    $region56: #{tpu_custom_call.1} parent=1 // pred_region
      %97 = dma.done [#allocation7], 9216
    $region57: #{tpu_custom_call.1} parent=1 // pred_fallthru
      _
    // Predicated region
    $region58: #{tpu_custom_call.1} parent=1 // pred_check
      _
    $region59: #{tpu_custom_call.1} parent=1 // pred_check_branch
      %99 = sbr.rel (0) target = $region61
    $region60: #{tpu_custom_call.1} parent=1 // pred_region
      %101 = dma.done [#allocation10], 2048
    $region61: #{tpu_custom_call.1} parent=1 // pred_fallthru
      _
    %v103 = vld [vmem:[#allocation9] sm:$0xff]
    %v104 = vld [vmem:[#allocation9 + $0x8] sm:$0xff]
    %v105 = vld [vmem:[#allocation9 + $0x10] sm:$0xff]
    %v106 = vld [vmem:[#allocation9 + $0x18] sm:$0xff]
    %v107 = vld [vmem:[#allocation9 + $0x20] sm:$0xff]
    %v108 = vld [vmem:[#allocation9 + $0x28] sm:$0xff]
    %v109 = vld [vmem:[#allocation9 + $0x30] sm:$0xff]
    %v110 = vld [vmem:[#allocation9 + $0x38] sm:$0xff]
    %v111 = vld [vmem:[#allocation9 + $0x40] sm:$0xff]
    %v112 = vld [vmem:[#allocation9 + $0x48] sm:$0xff]
    %v113 = vld [vmem:[#allocation9 + $0x50] sm:$0xff]
    %v114 = vld [vmem:[#allocation9 + $0x58] sm:$0xff]
    %v115 = vld [vmem:[#allocation9 + $0x60] sm:$0xff]
    %v116 = vld [vmem:[#allocation9 + $0x68] sm:$0xff]
    %v117 = vld [vmem:[#allocation9 + $0x70] sm:$0xff]
    %v118 = vld [vmem:[#allocation9 + $0x78] sm:$0xff]
    %v119 = vld [vmem:[#allocation3] sm:$0xff]
    %v120 = vld [vmem:[#allocation3 + $0x8] sm:$0xff]
    %v121 = vld [vmem:[#allocation3 + $0x10] sm:$0xf]
    %v122 = vld [vmem:[#allocation3 + $0x14] sm:$0xff]
    %v123 = vld [vmem:[#allocation3 + $0x1c] sm:$0xff]
    %v124 = vld [vmem:[#allocation3 + $0x24] sm:$0xf]
    %v125 = vld [vmem:[#allocation3 + $0x28] sm:$0xff]
    %v126 = vld [vmem:[#allocation3 + $0x30] sm:$0xff]
    %v127 = vld [vmem:[#allocation3 + $0x38] sm:$0xf]
    %v128 = vld [vmem:[#allocation3 + $0x3c] sm:$0xff]
    %v129 = vld [vmem:[#allocation3 + $0x44] sm:$0xff]
    %v130 = vld [vmem:[#allocation3 + $0x4c] sm:$0xf]
    %v131 = vld [vmem:[#allocation6] sm:$0xff]
    %v132 = vld [vmem:[#allocation6 + $0x8] sm:$0xff]
    %v133 = vld [vmem:[#allocation6 + $0x10] sm:$0xff]
    %v134 = vld [vmem:[#allocation6 + $0x18] sm:$0xff]
    %v135 = vld [vmem:[#allocation6 + $0x20] sm:$0xff]
    %v136 = vld [vmem:[#allocation6 + $0x28] sm:$0xff]
    %v137 = vld [vmem:[#allocation6 + $0x30] sm:$0xff]
    %v138 = vld [vmem:[#allocation6 + $0x38] sm:$0xff]
    %v139 = vld [vmem:[#allocation6 + $0x40] sm:$0xff]
    %v140 = vld [vmem:[#allocation6 + $0x48] sm:$0xff]
    %v141 = vld [vmem:[#allocation6 + $0x50] sm:$0xff]
    %v142 = vld [vmem:[#allocation6 + $0x58] sm:$0xff]
    %v143 = vld [vmem:[#allocation6 + $0x60] sm:$0xff]
    %v144 = vld [vmem:[#allocation6 + $0x68] sm:$0xff]
    %v145 = vld [vmem:[#allocation6 + $0x70] sm:$0xff]
    %v146 = vld [vmem:[#allocation6 + $0x78] sm:$0xff]
    %v147 = vld [vmem:[#allocation6 + $0x80] sm:$0xff]
    %v148 = vld [vmem:[#allocation6 + $0x88] sm:$0xff]
    %v149 = vld [vmem:[#allocation6 + $0x90] sm:$0xff]
    %v150 = vld [vmem:[#allocation6 + $0x98] sm:$0xff]
    %v151 = vld [vmem:[#allocation6 + $0xa0] sm:$0xff]
    %v152 = vld [vmem:[#allocation6 + $0xa8] sm:$0xff]
    %v153 = vld [vmem:[#allocation6 + $0xb0] sm:$0xff]
    %v154 = vld [vmem:[#allocation6 + $0xb8] sm:$0xff]
    %v155 = vld [vmem:[#allocation6 + $0xc0] sm:$0xff]
    %v156 = vld [vmem:[#allocation6 + $0xc8] sm:$0xff]
    %v157 = vld [vmem:[#allocation6 + $0xd0] sm:$0xff]
    %v158 = vld [vmem:[#allocation6 + $0xd8] sm:$0xff]
    %v159 = vld [vmem:[#allocation6 + $0xe0] sm:$0xff]
    %v160 = vld [vmem:[#allocation6 + $0xe8] sm:$0xff]
    %v161 = vld [vmem:[#allocation6 + $0xf0] sm:$0xff]
    %v162 = vld [vmem:[#allocation6 + $0xf8] sm:$0xff]
    %v163 = vld [vmem:[#allocation6 + $0x100] sm:$0xff]
    %v164 = vld [vmem:[#allocation6 + $0x108] sm:$0xff]
    %v165 = vld [vmem:[#allocation6 + $0x110] sm:$0xff]
    %v166 = vld [vmem:[#allocation6 + $0x118] sm:$0xff]
    %v167 = vld [vmem:[#allocation6 + $0x120] sm:$0xff]
    %v168 = vld [vmem:[#allocation6 + $0x128] sm:$0xff]
    %v169 = vld [vmem:[#allocation6 + $0x130] sm:$0xff]
    %v170 = vld [vmem:[#allocation6 + $0x138] sm:$0xff]
    %v171 = vld [vmem:[#allocation6 + $0x140] sm:$0xff]
    %v172 = vld [vmem:[#allocation6 + $0x148] sm:$0xff]
    %v173 = vld [vmem:[#allocation6 + $0x150] sm:$0xff]
    %v174 = vld [vmem:[#allocation6 + $0x158] sm:$0xff]
    %v175 = vld [vmem:[#allocation6 + $0x160] sm:$0xff]
    %v176 = vld [vmem:[#allocation6 + $0x168] sm:$0xff]
    %v177 = vld [vmem:[#allocation6 + $0x170] sm:$0xff]
    %v178 = vld [vmem:[#allocation6 + $0x178] sm:$0xff]
    %v179 = vld [vmem:[#allocation6 + $0x180] sm:$0xff]
    %v180 = vld [vmem:[#allocation6 + $0x188] sm:$0xff]
    %v181 = vld [vmem:[#allocation6 + $0x190] sm:$0xff]
    %v182 = vld [vmem:[#allocation6 + $0x198] sm:$0xff]
    %v183 = vld [vmem:[#allocation6 + $0x1a0] sm:$0xff]
    %v184 = vld [vmem:[#allocation6 + $0x1a8] sm:$0xff]
    %v185 = vld [vmem:[#allocation6 + $0x1b0] sm:$0xff]
    %v186 = vld [vmem:[#allocation6 + $0x1b8] sm:$0xff]
    %v187 = vld [vmem:[#allocation6 + $0x1c0] sm:$0xff]
    %v188 = vld [vmem:[#allocation6 + $0x1c8] sm:$0xff]
    %v189 = vld [vmem:[#allocation6 + $0x1d0] sm:$0xff]
    %v190 = vld [vmem:[#allocation6 + $0x1d8] sm:$0xff]
    %v191 = vld [vmem:[#allocation6 + $0x1e0] sm:$0xff]
    %v192 = vld [vmem:[#allocation6 + $0x1e8] sm:$0xff]
    %v193 = vld [vmem:[#allocation6 + $0x1f0] sm:$0xff]
    %v194 = vld [vmem:[#allocation6 + $0x1f8] sm:$0xff]
    %v195 = vld [vmem:[#allocation6 + $0x200] sm:$0xff]
    %v196 = vld [vmem:[#allocation6 + $0x208] sm:$0xff]
    %v197 = vld [vmem:[#allocation6 + $0x210] sm:$0xff]
    %v198 = vld [vmem:[#allocation6 + $0x218] sm:$0xff]
    %v199 = vld [vmem:[#allocation6 + $0x220] sm:$0xff]
    %v200 = vld [vmem:[#allocation6 + $0x228] sm:$0xff]
    %v201 = vld [vmem:[#allocation6 + $0x230] sm:$0xff]
    %v202 = vld [vmem:[#allocation6 + $0x238] sm:$0xff]
    %v203 = vld [vmem:[#allocation6 + $0x240] sm:$0xff]
    %v204 = vld [vmem:[#allocation6 + $0x248] sm:$0xff]
    %v205 = vld [vmem:[#allocation6 + $0x250] sm:$0xff]
    %v206 = vld [vmem:[#allocation6 + $0x258] sm:$0xff]
    %v207 = vld [vmem:[#allocation6 + $0x260] sm:$0xff]
    %v208 = vld [vmem:[#allocation6 + $0x268] sm:$0xff]
    %v209 = vld [vmem:[#allocation6 + $0x270] sm:$0xff]
    %v210 = vld [vmem:[#allocation6 + $0x278] sm:$0xff]
    %v223 = vunpack.c.l.b16 %v119
    %v224 = vunpack.c.h.b16 %v119
    %v225 = vunpack.c.l.b16 %v120
    %v226 = vunpack.c.h.b16 %v120
    %v227 = vunpack.c.l.b16 %v121
    %v228 = vunpack.c.l.b16 %v122
    %v229 = vunpack.c.h.b16 %v122
    %v230 = vunpack.c.l.b16 %v123
    %v231 = vunpack.c.h.b16 %v123
    %v232 = vunpack.c.l.b16 %v124
    %v233 = vunpack.c.l.b16 %v125
    %v234 = vunpack.c.h.b16 %v125
    %v235 = vunpack.c.l.b16 %v126
    %v236 = vunpack.c.h.b16 %v126
    %v237 = vunpack.c.l.b16 %v127
    %v238 = vunpack.c.l.b16 %v128
    %v239 = vunpack.c.h.b16 %v128
    %v240 = vunpack.c.l.b16 %v129
    %v241 = vunpack.c.h.b16 %v129
    %v242 = vunpack.c.l.b16 %v130
    %v243 = vpack.c.b16 %v228, %v223
    %v244 = vpack.c.b16 %v229, %v224
    %v245 = vpack.c.b16 %v230, %v225
    %v246 = vpack.c.b16 %v231, %v226
    %v247 = vpack.c.b16 %v232, %v227
    %v248 = vpack.c.b16 %v238, %v233
    %v249 = vpack.c.b16 %v239, %v234
    %v250 = vpack.c.b16 %v240, %v235
    %v251 = vpack.c.b16 %v241, %v236
    %v252 = vpack.c.b16 %v242, %v237
    %v343 = vunpack.c.l.b16 %v131
    %v344 = vunpack.c.h.b16 %v131
    %v345 = vunpack.c.l.b16 %v132
    %v346 = vunpack.c.h.b16 %v132
    %v347 = vunpack.c.l.b16 %v133
    %v348 = vunpack.c.h.b16 %v133
    %v349 = vunpack.c.l.b16 %v134
    %v350 = vunpack.c.h.b16 %v134
    %v351 = vunpack.c.l.b16 %v135
    %v352 = vunpack.c.h.b16 %v135
    %v353 = vunpack.c.l.b16 %v136
    %v354 = vunpack.c.h.b16 %v136
    %v355 = vunpack.c.l.b16 %v137
    %v356 = vunpack.c.h.b16 %v137
    %v357 = vunpack.c.l.b16 %v138
    %v358 = vunpack.c.h.b16 %v138
    %v359 = vunpack.c.l.b16 %v139
    %v360 = vunpack.c.h.b16 %v139
    %v361 = vunpack.c.l.b16 %v140
    %v362 = vunpack.c.h.b16 %v140
    %v363 = vunpack.c.l.b16 %v141
    %v364 = vunpack.c.h.b16 %v141
    %v365 = vunpack.c.l.b16 %v142
    %v366 = vunpack.c.h.b16 %v142
    %v367 = vunpack.c.l.b16 %v143
    %v368 = vunpack.c.h.b16 %v143
    %v369 = vunpack.c.l.b16 %v144
    %v370 = vunpack.c.h.b16 %v144
    %v371 = vunpack.c.l.b16 %v145
    %v372 = vunpack.c.h.b16 %v145
    %v373 = vunpack.c.l.b16 %v146
    %v374 = vunpack.c.h.b16 %v146
    %v375 = vunpack.c.l.b16 %v147
    %v376 = vunpack.c.h.b16 %v147
    %v377 = vunpack.c.l.b16 %v148
    %v378 = vunpack.c.h.b16 %v148
    %v379 = vunpack.c.l.b16 %v149
    %v380 = vunpack.c.h.b16 %v149
    %v381 = vunpack.c.l.b16 %v150
    %v382 = vunpack.c.h.b16 %v150
    %v383 = vunpack.c.l.b16 %v151
    %v384 = vunpack.c.h.b16 %v151
    %v385 = vunpack.c.l.b16 %v152
    %v386 = vunpack.c.h.b16 %v152
    %v387 = vunpack.c.l.b16 %v153
    %v388 = vunpack.c.h.b16 %v153
    %v389 = vunpack.c.l.b16 %v154
    %v390 = vunpack.c.h.b16 %v154
    %v391 = vunpack.c.l.b16 %v155
    %v392 = vunpack.c.h.b16 %v155
    %v393 = vunpack.c.l.b16 %v156
    %v394 = vunpack.c.h.b16 %v156
    %v395 = vunpack.c.l.b16 %v157
    %v396 = vunpack.c.h.b16 %v157
    %v397 = vunpack.c.l.b16 %v158
    %v398 = vunpack.c.h.b16 %v158
    %v399 = vunpack.c.l.b16 %v159
    %v400 = vunpack.c.h.b16 %v159
    %v401 = vunpack.c.l.b16 %v160
    %v402 = vunpack.c.h.b16 %v160
    %v403 = vunpack.c.l.b16 %v161
    %v404 = vunpack.c.h.b16 %v161
    %v405 = vunpack.c.l.b16 %v162
    %v406 = vunpack.c.h.b16 %v162
    %v407 = vunpack.c.l.b16 %v163
    %v408 = vunpack.c.h.b16 %v163
    %v409 = vunpack.c.l.b16 %v164
    %v410 = vunpack.c.h.b16 %v164
    %v411 = vunpack.c.l.b16 %v165
    %v412 = vunpack.c.h.b16 %v165
    %v413 = vunpack.c.l.b16 %v166
    %v414 = vunpack.c.h.b16 %v166
    %v415 = vunpack.c.l.b16 %v167
    %v416 = vunpack.c.h.b16 %v167
    %v417 = vunpack.c.l.b16 %v168
    %v418 = vunpack.c.h.b16 %v168
    %v419 = vunpack.c.l.b16 %v169
    %v420 = vunpack.c.h.b16 %v169
    %v421 = vunpack.c.l.b16 %v170
    %v422 = vunpack.c.h.b16 %v170
    %v423 = vunpack.c.l.b16 %v171
    %v424 = vunpack.c.h.b16 %v171
    %v425 = vunpack.c.l.b16 %v172
    %v426 = vunpack.c.h.b16 %v172
    %v427 = vunpack.c.l.b16 %v173
    %v428 = vunpack.c.h.b16 %v173
    %v429 = vunpack.c.l.b16 %v174
    %v430 = vunpack.c.h.b16 %v174
    %v431 = vunpack.c.l.b16 %v175
    %v432 = vunpack.c.h.b16 %v175
    %v433 = vunpack.c.l.b16 %v176
    %v434 = vunpack.c.h.b16 %v176
    %v435 = vunpack.c.l.b16 %v177
    %v436 = vunpack.c.h.b16 %v177
    %v437 = vunpack.c.l.b16 %v178
    %v438 = vunpack.c.h.b16 %v178
    %v439 = vunpack.c.l.b16 %v179
    %v440 = vunpack.c.h.b16 %v179
    %v441 = vunpack.c.l.b16 %v180
    %v442 = vunpack.c.h.b16 %v180
    %v443 = vunpack.c.l.b16 %v181
    %v444 = vunpack.c.h.b16 %v181
    %v445 = vunpack.c.l.b16 %v182
    %v446 = vunpack.c.h.b16 %v182
    %v447 = vunpack.c.l.b16 %v183
    %v448 = vunpack.c.h.b16 %v183
    %v449 = vunpack.c.l.b16 %v184
    %v450 = vunpack.c.h.b16 %v184
    %v451 = vunpack.c.l.b16 %v185
    %v452 = vunpack.c.h.b16 %v185
    %v453 = vunpack.c.l.b16 %v186
    %v454 = vunpack.c.h.b16 %v186
    %v455 = vunpack.c.l.b16 %v187
    %v456 = vunpack.c.h.b16 %v187
    %v457 = vunpack.c.l.b16 %v188
    %v458 = vunpack.c.h.b16 %v188
    %v459 = vunpack.c.l.b16 %v189
    %v460 = vunpack.c.h.b16 %v189
    %v461 = vunpack.c.l.b16 %v190
    %v462 = vunpack.c.h.b16 %v190
    %v463 = vunpack.c.l.b16 %v191
    %v464 = vunpack.c.h.b16 %v191
    %v465 = vunpack.c.l.b16 %v192
    %v466 = vunpack.c.h.b16 %v192
    %v467 = vunpack.c.l.b16 %v193
    %v468 = vunpack.c.h.b16 %v193
    %v469 = vunpack.c.l.b16 %v194
    %v470 = vunpack.c.h.b16 %v194
    %v471 = vunpack.c.l.b16 %v195
    %v472 = vunpack.c.h.b16 %v195
    %v473 = vunpack.c.l.b16 %v196
    %v474 = vunpack.c.h.b16 %v196
    %v475 = vunpack.c.l.b16 %v197
    %v476 = vunpack.c.h.b16 %v197
    %v477 = vunpack.c.l.b16 %v198
    %v478 = vunpack.c.h.b16 %v198
    %v479 = vunpack.c.l.b16 %v199
    %v480 = vunpack.c.h.b16 %v199
    %v481 = vunpack.c.l.b16 %v200
    %v482 = vunpack.c.h.b16 %v200
    %v483 = vunpack.c.l.b16 %v201
    %v484 = vunpack.c.h.b16 %v201
    %v485 = vunpack.c.l.b16 %v202
    %v486 = vunpack.c.h.b16 %v202
    %v487 = vunpack.c.l.b16 %v203
    %v488 = vunpack.c.h.b16 %v203
    %v489 = vunpack.c.l.b16 %v204
    %v490 = vunpack.c.h.b16 %v204
    %v491 = vunpack.c.l.b16 %v205
    %v492 = vunpack.c.h.b16 %v205
    %v493 = vunpack.c.l.b16 %v206
    %v494 = vunpack.c.h.b16 %v206
    %v495 = vunpack.c.l.b16 %v207
    %v496 = vunpack.c.h.b16 %v207
    %v497 = vunpack.c.l.b16 %v208
    %v498 = vunpack.c.h.b16 %v208
    %v499 = vunpack.c.l.b16 %v209
    %v500 = vunpack.c.h.b16 %v209
    %v501 = vunpack.c.l.b16 %v210
    %v502 = vunpack.c.h.b16 %v210
    %v503 = vpack.c.b16 %v345, %v343
    %v504 = vpack.c.b16 %v346, %v344
    %v505 = vpack.c.b16 %v349, %v347
    %v506 = vpack.c.b16 %v350, %v348
    %v507 = vpack.c.b16 %v353, %v351
    %v508 = vpack.c.b16 %v354, %v352
    %v509 = vpack.c.b16 %v357, %v355
    %v510 = vpack.c.b16 %v358, %v356
    %v511 = vpack.c.b16 %v361, %v359
    %v512 = vpack.c.b16 %v362, %v360
    %v513 = vpack.c.b16 %v365, %v363
    %v514 = vpack.c.b16 %v366, %v364
    %v515 = vpack.c.b16 %v369, %v367
    %v516 = vpack.c.b16 %v370, %v368
    %v517 = vpack.c.b16 %v373, %v371
    %v518 = vpack.c.b16 %v374, %v372
    %v519 = vpack.c.b16 %v377, %v375
    %v520 = vpack.c.b16 %v378, %v376
    %v521 = vpack.c.b16 %v381, %v379
    %v522 = vpack.c.b16 %v382, %v380
    %v523 = vpack.c.b16 %v385, %v383
    %v524 = vpack.c.b16 %v386, %v384
    %v525 = vpack.c.b16 %v389, %v387
    %v526 = vpack.c.b16 %v390, %v388
    %v527 = vpack.c.b16 %v393, %v391
    %v528 = vpack.c.b16 %v394, %v392
    %v529 = vpack.c.b16 %v397, %v395
    %v530 = vpack.c.b16 %v398, %v396
    %v531 = vpack.c.b16 %v401, %v399
    %v532 = vpack.c.b16 %v402, %v400
    %v533 = vpack.c.b16 %v405, %v403
    %v534 = vpack.c.b16 %v406, %v404
    %v535 = vpack.c.b16 %v409, %v407
    %v536 = vpack.c.b16 %v410, %v408
    %v537 = vpack.c.b16 %v413, %v411
    %v538 = vpack.c.b16 %v414, %v412
    %v539 = vpack.c.b16 %v417, %v415
    %v540 = vpack.c.b16 %v418, %v416
    %v541 = vpack.c.b16 %v421, %v419
    %v542 = vpack.c.b16 %v422, %v420
    %v543 = vpack.c.b16 %v425, %v423
    %v544 = vpack.c.b16 %v426, %v424
    %v545 = vpack.c.b16 %v429, %v427
    %v546 = vpack.c.b16 %v430, %v428
    %v547 = vpack.c.b16 %v433, %v431
    %v548 = vpack.c.b16 %v434, %v432
    %v549 = vpack.c.b16 %v437, %v435
    %v550 = vpack.c.b16 %v438, %v436
    %v551 = vpack.c.b16 %v441, %v439
    %v552 = vpack.c.b16 %v442, %v440
    %v553 = vpack.c.b16 %v445, %v443
    %v554 = vpack.c.b16 %v446, %v444
    %v555 = vpack.c.b16 %v449, %v447
    %v556 = vpack.c.b16 %v450, %v448
    %v557 = vpack.c.b16 %v453, %v451
    %v558 = vpack.c.b16 %v454, %v452
    %v559 = vpack.c.b16 %v457, %v455
    %v560 = vpack.c.b16 %v458, %v456
    %v561 = vpack.c.b16 %v461, %v459
    %v562 = vpack.c.b16 %v462, %v460
    %v563 = vpack.c.b16 %v465, %v463
    %v564 = vpack.c.b16 %v466, %v464
    %v565 = vpack.c.b16 %v469, %v467
    %v566 = vpack.c.b16 %v470, %v468
    %v567 = vpack.c.b16 %v473, %v471
    %v568 = vpack.c.b16 %v474, %v472
    %v569 = vpack.c.b16 %v477, %v475
    %v570 = vpack.c.b16 %v478, %v476
    %v571 = vpack.c.b16 %v481, %v479
    %v572 = vpack.c.b16 %v482, %v480
    %v573 = vpack.c.b16 %v485, %v483
    %v574 = vpack.c.b16 %v486, %v484
    %v575 = vpack.c.b16 %v489, %v487
    %v576 = vpack.c.b16 %v490, %v488
    %v577 = vpack.c.b16 %v493, %v491
    %v578 = vpack.c.b16 %v494, %v492
    %v579 = vpack.c.b16 %v497, %v495
    %v580 = vpack.c.b16 %v498, %v496
    %v581 = vpack.c.b16 %v501, %v499
    %v582 = vpack.c.b16 %v502, %v500
    %663 = vmatpush.bf16.msra.mxu0 %v517
    %664 = vmatpush.bf16.msra.mxu0 %v515
    %665 = vmatpush.bf16.msra.mxu0 %v513
    %666 = vmatpush.bf16.msra.mxu0 %v511
    %667 = vmatpush.bf16.msra.mxu0 %v509
    %668 = vmatpush.bf16.msra.mxu0 %v507
    %669 = vmatpush.bf16.msra.mxu0 %v505
    %670 = vmatpush.bf16.msra.mxu0 %v503
    %671 = vmatmul.bf16.gmra.mxu0 %v243
    %v672 = vpop.f32.mrf.mxu0
    %v673 = vadd.f32 0.0, %v672
    %v674 = vpop.f32.mrf.mxu0
    %v675 = vadd.f32 0.0, %v674
    %676 = vmatmul.bf16.gmra.mxu0 %v248
    %v677 = vpop.f32.mrf.mxu0
    %v678 = vadd.f32 0.0, %v677
    %v679 = vpop.f32.mrf.mxu0
    %v680 = vadd.f32 0.0, %v679
    %681 = vdwg.mxu0
    %682 = vmatpush.bf16.msra.mxu0 %v533
    %683 = vmatpush.bf16.msra.mxu0 %v531
    %684 = vmatpush.bf16.msra.mxu0 %v529
    %685 = vmatpush.bf16.msra.mxu0 %v527
    %686 = vmatpush.bf16.msra.mxu0 %v525
    %687 = vmatpush.bf16.msra.mxu0 %v523
    %688 = vmatpush.bf16.msra.mxu0 %v521
    %689 = vmatpush.bf16.msra.mxu0 %v519
    %690 = vmatmul.bf16.gmra.mxu0 %v244
    %v691 = vpop.f32.mrf.mxu0
    %v692 = vadd.f32 %v673, %v691
    %v693 = vpop.f32.mrf.mxu0
    %v694 = vadd.f32 %v675, %v693
    %695 = vmatmul.bf16.gmra.mxu0 %v249
    %v696 = vpop.f32.mrf.mxu0
    %v697 = vadd.f32 %v678, %v696
    %v698 = vpop.f32.mrf.mxu0
    %v699 = vadd.f32 %v680, %v698
    %700 = vdwg.mxu0
    %701 = vmatpush.bf16.msra.mxu0 %v549
    %702 = vmatpush.bf16.msra.mxu0 %v547
    %703 = vmatpush.bf16.msra.mxu0 %v545
    %704 = vmatpush.bf16.msra.mxu0 %v543
    %705 = vmatpush.bf16.msra.mxu0 %v541
    %706 = vmatpush.bf16.msra.mxu0 %v539
    %707 = vmatpush.bf16.msra.mxu0 %v537
    %708 = vmatpush.bf16.msra.mxu0 %v535
    %709 = vmatmul.bf16.gmra.mxu0 %v245
    %v710 = vpop.f32.mrf.mxu0
    %v711 = vadd.f32 %v692, %v710
    %v712 = vpop.f32.mrf.mxu0
    %v713 = vadd.f32 %v694, %v712
    %714 = vmatmul.bf16.gmra.mxu0 %v250
    %v715 = vpop.f32.mrf.mxu0
    %v716 = vadd.f32 %v697, %v715
    %v717 = vpop.f32.mrf.mxu0
    %v718 = vadd.f32 %v699, %v717
    %719 = vdwg.mxu0
    %720 = vmatpush.bf16.msra.mxu0 %v565
    %721 = vmatpush.bf16.msra.mxu0 %v563
    %722 = vmatpush.bf16.msra.mxu0 %v561
    %723 = vmatpush.bf16.msra.mxu0 %v559
    %724 = vmatpush.bf16.msra.mxu0 %v557
    %725 = vmatpush.bf16.msra.mxu0 %v555
    %726 = vmatpush.bf16.msra.mxu0 %v553
    %727 = vmatpush.bf16.msra.mxu0 %v551
    %728 = vmatmul.bf16.gmra.mxu0 %v246
    %v729 = vpop.f32.mrf.mxu0
    %v730 = vadd.f32 %v711, %v729
    %v731 = vpop.f32.mrf.mxu0
    %v732 = vadd.f32 %v713, %v731
    %733 = vmatmul.bf16.gmra.mxu0 %v251
    %v734 = vpop.f32.mrf.mxu0
    %v735 = vadd.f32 %v716, %v734
    %v736 = vpop.f32.mrf.mxu0
    %v737 = vadd.f32 %v718, %v736
    %738 = vdwg.mxu0
    %739 = vmatpush.bf16.msra.mxu0 %v581
    %740 = vmatpush.bf16.msra.mxu0 %v579
    %741 = vmatpush.bf16.msra.mxu0 %v577
    %742 = vmatpush.bf16.msra.mxu0 %v575
    %743 = vmatpush.bf16.msra.mxu0 %v573
    %744 = vmatpush.bf16.msra.mxu0 %v571
    %745 = vmatpush.bf16.msra.mxu0 %v569
    %746 = vmatpush.bf16.msra.mxu0 %v567
    %747 = vmatmul.bf16.gmra.mxu0 %v247
    %v748 = vpop.f32.mrf.mxu0
    %v749 = vadd.f32 %v730, %v748
    %v750 = vpop.f32.mrf.mxu0
    %v751 = vadd.f32 %v732, %v750
    %752 = vmatmul.bf16.gmra.mxu0 %v252
    %v753 = vpop.f32.mrf.mxu0
    %v754 = vadd.f32 %v735, %v753
    %v755 = vpop.f32.mrf.mxu0
    %v756 = vadd.f32 %v737, %v755
    %757 = vdwg.mxu0
    %758 = vmatpush.bf16.msra.mxu0 %v518
    %759 = vmatpush.bf16.msra.mxu0 %v516
    %760 = vmatpush.bf16.msra.mxu0 %v514
    %761 = vmatpush.bf16.msra.mxu0 %v512
    %762 = vmatpush.bf16.msra.mxu0 %v510
    %763 = vmatpush.bf16.msra.mxu0 %v508
    %764 = vmatpush.bf16.msra.mxu0 %v506
    %765 = vmatpush.bf16.msra.mxu0 %v504
    %766 = vmatmul.bf16.gmra.mxu0 %v243
    %v767 = vpop.f32.mrf.mxu0
    %v768 = vadd.f32 0.0, %v767
    %v769 = vpop.f32.mrf.mxu0
    %v770 = vadd.f32 0.0, %v769
    %771 = vmatmul.bf16.gmra.mxu0 %v248
    %v772 = vpop.f32.mrf.mxu0
    %v773 = vadd.f32 0.0, %v772
    %v774 = vpop.f32.mrf.mxu0
    %v775 = vadd.f32 0.0, %v774
    %776 = vdwg.mxu0
    %777 = vmatpush.bf16.msra.mxu0 %v534
    %778 = vmatpush.bf16.msra.mxu0 %v532
    %779 = vmatpush.bf16.msra.mxu0 %v530
    %780 = vmatpush.bf16.msra.mxu0 %v528
    %781 = vmatpush.bf16.msra.mxu0 %v526
    %782 = vmatpush.bf16.msra.mxu0 %v524
    %783 = vmatpush.bf16.msra.mxu0 %v522
    %784 = vmatpush.bf16.msra.mxu0 %v520
    %785 = vmatmul.bf16.gmra.mxu0 %v244
    %v786 = vpop.f32.mrf.mxu0
    %v787 = vadd.f32 %v768, %v786
    %v788 = vpop.f32.mrf.mxu0
    %v789 = vadd.f32 %v770, %v788
    %790 = vmatmul.bf16.gmra.mxu0 %v249
    %v791 = vpop.f32.mrf.mxu0
    %v792 = vadd.f32 %v773, %v791
    %v793 = vpop.f32.mrf.mxu0
    %v794 = vadd.f32 %v775, %v793
    %795 = vdwg.mxu0
    %796 = vmatpush.bf16.msra.mxu0 %v550
    %797 = vmatpush.bf16.msra.mxu0 %v548
    %798 = vmatpush.bf16.msra.mxu0 %v546
    %799 = vmatpush.bf16.msra.mxu0 %v544
    %800 = vmatpush.bf16.msra.mxu0 %v542
    %801 = vmatpush.bf16.msra.mxu0 %v540
    %802 = vmatpush.bf16.msra.mxu0 %v538
    %803 = vmatpush.bf16.msra.mxu0 %v536
    %804 = vmatmul.bf16.gmra.mxu0 %v245
    %v805 = vpop.f32.mrf.mxu0
    %v806 = vadd.f32 %v787, %v805
    %v807 = vpop.f32.mrf.mxu0
    %v808 = vadd.f32 %v789, %v807
    %809 = vmatmul.bf16.gmra.mxu0 %v250
    %v810 = vpop.f32.mrf.mxu0
    %v811 = vadd.f32 %v792, %v810
    %v812 = vpop.f32.mrf.mxu0
    %v813 = vadd.f32 %v794, %v812
    %814 = vdwg.mxu0
    %815 = vmatpush.bf16.msra.mxu0 %v566
    %816 = vmatpush.bf16.msra.mxu0 %v564
    %817 = vmatpush.bf16.msra.mxu0 %v562
    %818 = vmatpush.bf16.msra.mxu0 %v560
    %819 = vmatpush.bf16.msra.mxu0 %v558
    %820 = vmatpush.bf16.msra.mxu0 %v556
    %821 = vmatpush.bf16.msra.mxu0 %v554
    %822 = vmatpush.bf16.msra.mxu0 %v552
    %823 = vmatmul.bf16.gmra.mxu0 %v246
    %v824 = vpop.f32.mrf.mxu0
    %v825 = vadd.f32 %v806, %v824
    %v826 = vpop.f32.mrf.mxu0
    %v827 = vadd.f32 %v808, %v826
    %828 = vmatmul.bf16.gmra.mxu0 %v251
    %v829 = vpop.f32.mrf.mxu0
    %v830 = vadd.f32 %v811, %v829
    %v831 = vpop.f32.mrf.mxu0
    %v832 = vadd.f32 %v813, %v831
    %833 = vdwg.mxu0
    %834 = vmatpush.bf16.msra.mxu0 %v582
    %835 = vmatpush.bf16.msra.mxu0 %v580
    %836 = vmatpush.bf16.msra.mxu0 %v578
    %837 = vmatpush.bf16.msra.mxu0 %v576
    %838 = vmatpush.bf16.msra.mxu0 %v574
    %839 = vmatpush.bf16.msra.mxu0 %v572
    %840 = vmatpush.bf16.msra.mxu0 %v570
    %841 = vmatpush.bf16.msra.mxu0 %v568
    %842 = vmatmul.bf16.gmra.mxu0 %v247
    %v843 = vpop.f32.mrf.mxu0
    %v844 = vadd.f32 %v825, %v843
    %v845 = vpop.f32.mrf.mxu0
    %v846 = vadd.f32 %v827, %v845
    %847 = vmatmul.bf16.gmra.mxu0 %v252
    %v848 = vpop.f32.mrf.mxu0
    %v849 = vadd.f32 %v830, %v848
    %v850 = vpop.f32.mrf.mxu0
    %v851 = vadd.f32 %v832, %v850
    %852 = vdwg.mxu0
    %v853 = vld [vmem:[%s4] sm:$0x1]
    %v855 = vperm.slane %v853, 0
    %v857 = vadd.f32 %v749, %v855
    %v858 = vadd.f32 %v751, %v855
    %v859 = vadd.f32 %v754, %v855
    %v860 = vadd.f32 %v756, %v855
    %v861 = vld [vmem:[%s10] sm:$0x1]
    %v863 = vperm.slane %v861, 0
    %v865 = vadd.f32 %v844, %v863
    %v866 = vadd.f32 %v846, %v863
    %v867 = vadd.f32 %v849, %v863
    %v868 = vadd.f32 %v851, %v863
    %v869 = vld [vmem:[%s5] sm:$0x1]
    %v870 = vld [vmem:[%s6] sm:$0x1]
    %v871 = vadd.f32 %v857, %v858
    %v872 = vadd.f32 %v871, %v859
    %v873 = vadd.f32 %v872, %v860
    %v874 = vrot.slane %v873, 4
    %v875 = vadd.f32 %v873, %v874
    %v876 = vrot.slane %v875, 2
    %v877 = vadd.f32 %v875, %v876
    %v878 = vrot.slane %v877, 1
    %v879 = vadd.f32 %v877, %v878
    %v880 = vmul.f32 %v857, %v857
    %v881 = vmul.f32 %v858, %v858
    %v882 = vmul.f32 %v859, %v859
    %v883 = vmul.f32 %v860, %v860
    %v884 = vadd.f32 %v880, %v881
    %v885 = vadd.f32 %v884, %v882
    %v886 = vadd.f32 %v885, %v883
    %v887 = vrot.slane %v886, 4
    %v888 = vadd.f32 %v886, %v887
    %v889 = vrot.slane %v888, 2
    %v890 = vadd.f32 %v888, %v889
    %v891 = vrot.slane %v890, 1
    %v892 = vadd.f32 %v890, %v891
    %893 = vmatpush.msra.mxu0 %v118
    %894 = vmatpush.msra.mxu0 %v117
    %895 = vmatpush.msra.mxu0 %v116
    %896 = vmatpush.msra.mxu0 %v115
    %897 = vmatpush.msra.mxu0 %v114
    %898 = vmatpush.msra.mxu0 %v113
    %899 = vmatpush.msra.mxu0 %v112
    %900 = vmatpush.msra.mxu0 %v111
    %901 = vmatpush.msra.mxu0 %v110
    %902 = vmatpush.msra.mxu0 %v109
    %903 = vmatpush.msra.mxu0 %v108
    %904 = vmatpush.msra.mxu0 %v107
    %905 = vmatpush.msra.mxu0 %v106
    %906 = vmatpush.msra.mxu0 %v105
    %907 = vmatpush.msra.mxu0 %v104
    %908 = vmatpush.msra.mxu0 %v103
    %909 = vmatmul.f32.gmra.mxu0 %v879
    %v910 = vpop.f32.mrf.mxu0
    %v911 = vadd.f32 0.0, %v910
    %912 = vdwg.mxu0
    %v913 = vmul.f32 %v911, 0.001953125
    %914 = vmatpush.msra.mxu0 %v118
    %915 = vmatpush.msra.mxu0 %v117
    %916 = vmatpush.msra.mxu0 %v116
    %917 = vmatpush.msra.mxu0 %v115
    %918 = vmatpush.msra.mxu0 %v114
    %919 = vmatpush.msra.mxu0 %v113
    %920 = vmatpush.msra.mxu0 %v112
    %921 = vmatpush.msra.mxu0 %v111
    %922 = vmatpush.msra.mxu0 %v110
    %923 = vmatpush.msra.mxu0 %v109
    %924 = vmatpush.msra.mxu0 %v108
    %925 = vmatpush.msra.mxu0 %v107
    %926 = vmatpush.msra.mxu0 %v106
    %927 = vmatpush.msra.mxu0 %v105
    %928 = vmatpush.msra.mxu0 %v104
    %929 = vmatpush.msra.mxu0 %v103
    %930 = vmatmul.f32.gmra.mxu0 %v892
    %v931 = vpop.f32.mrf.mxu0
    %v932 = vadd.f32 0.0, %v931
    %933 = vdwg.mxu0
    %v934 = vmul.f32 %v932, 0.001953125
    %v935 = vmul.f32 %v913, %v913
    %v936 = vsub.f32 %v934, %v935
    %v937 = vperm.slane %v913, 0
    %v938 = vsub.f32 %v857, %v937
    %v939 = vsub.f32 %v858, %v937
    %v940 = vsub.f32 %v859, %v937
    %v941 = vsub.f32 %v860, %v937
    %v942 = vadd.f32 %v936, 1e-05
    %v943 = vrsqrt.pop %v942
    %v944 = vmul.f32 %v943, %v942
    %v945 = vmul.f32 %v944, %v943
    %v946 = vmul.f32 0.5, %v945
    %v947 = vsub.f32 1.5, %v946
    %v948 = vmul.f32 %v943, %v947
    %vm949 = vweird.f32 %v942
    %vm950 = vweird.f32 %v943
    %vm951 = vmor %vm949, %vm950
    %v952 = vsel %vm951, %v943, %v948
    %v953 = vperm.slane %v952, 0
    %v954 = vmul.f32 %v938, %v953
    %v955 = vmul.f32 %v939, %v953
    %v956 = vmul.f32 %v940, %v953
    %v957 = vmul.f32 %v941, %v953
    %v959 = vperm.slane %v869, 0
    %v961 = vmul.f32 %v954, %v959
    %v962 = vmul.f32 %v955, %v959
    %v963 = vmul.f32 %v956, %v959
    %v964 = vmul.f32 %v957, %v959
    %v966 = vperm.slane %v870, 0
    %v968 = vadd.f32 %v961, %v966
    %v969 = vadd.f32 %v962, %v966
    %v970 = vadd.f32 %v963, %v966
    %v971 = vadd.f32 %v964, %v966
    %v972 = vmax.f32 %v968, 0.0
    %v973 = vmax.f32 %v969, 0.0
    %v974 = vmax.f32 %v970, 0.0
    %v975 = vmax.f32 %v971, 0.0
    %vm976 = vcmask 1040384
    %vm977 = vsmask.f32 256
    %vm978 = vmand %vm976, %vm977
    %vm979 = vcmask 126980
    %vm980 = vsmask.f32 4352
    %vm981 = vmand %vm979, %vm980
    %vm982 = vmor %vm981, %vm978
    %v983 = vld [vmem:[#allocation2] sm:$0x11]
    %v984 = vsel %vm982, 0, %v983
    %985 = vst [vmem:[#allocation2] sm:$0x11] %v984
    %v986 = vld [vmem:[#allocation2 + $0x18] sm:$0x11]
    %v987 = vsel %vm982, 0, %v986
    %988 = vst [vmem:[#allocation2 + $0x18] sm:$0x11] %v987
    %vm989 = vsmask.f32 7938
    %vm990 = vmand %vm976, %vm989
    %vm991 = vsmask.f32 7954
    %vm992 = vmand %vm979, %vm991
    %vm993 = vmor %vm992, %vm990
    %v994 = vld [vmem:[#allocation2 + $0x10] sm:$0x11]
    %v995 = vsel %vm993, 0, %v994
    %996 = vst [vmem:[#allocation2 + $0x10] sm:$0x11] %v995
    %v997 = vld [vmem:[#allocation2 + $0x28] sm:$0x11]
    %v998 = vsel %vm993, 0, %v997
    %999 = vst [vmem:[#allocation2 + $0x28] sm:$0x11] %v998
    %vm1000 = vcmask 60416
    %1001 = vst.msk [vmem:[#allocation2] sm:$0xf] %vm1000, 0
    %1002 = vst.msk [vmem:[#allocation2 + $0x8] sm:$0xf] %vm1000, 0
    %vm1003 = vcmask 57344
    %1004 = vst.msk [vmem:[#allocation2 + $0x10] sm:$0x1] %vm1003, 0
    %1005 = vst.msk [vmem:[#allocation2 + $0x18] sm:$0xf] %vm1000, 0
    %1006 = vst.msk [vmem:[#allocation2 + $0x20] sm:$0xf] %vm1000, 0
    %1007 = vst.msk [vmem:[#allocation2 + $0x28] sm:$0x1] %vm1003, 0
    %vm1008 = vcmask 126016
    %1009 = vst.msk [vmem:[#allocation2 + $0x4] sm:$0xf] %vm1008, 0
    %1010 = vst.msk [vmem:[#allocation2 + $0xc] sm:$0xf] %vm1008, 0
    %vm1011 = vcmask 122944
    %1012 = vst.msk [vmem:[#allocation2 + $0x14] sm:$0x1] %vm1011, 0
    %1013 = vst.msk [vmem:[#allocation2 + $0x1c] sm:$0xf] %vm1008, 0
    %1014 = vst.msk [vmem:[#allocation2 + $0x24] sm:$0xf] %vm1008, 0
    %1015 = vst.msk [vmem:[#allocation2 + $0x2c] sm:$0x1] %vm1011, 0
    %v1016 = vpack.c.bf16 %v972, %v972
    %v1017 = vpack.c.bf16 %v973, %v973
    %v1018 = vpack.c.bf16 %v974, %v974
    %v1019 = vpack.c.bf16 %v975, %v975
    %vm1020 = vsmask.f32 4368
    %vm1021 = vmor %vm977, %vm1020
    %v1023 = vshrl.u32 %v1016, 16
    %v1025 = vrot.slane %v1023, 7
    %v1026 = vshll.u32 %v1016, 16
    %v1028 = vor.u32 %v1025, %v1026
    %v1029 = vrot.slane %v1025, 4
    %v1031 = vshrl.u32 %v1017, 16
    %v1033 = vrot.slane %v1031, 7
    %v1034 = vshll.u32 %v1017, 16
    %v1036 = vor.u32 %v1033, %v1034
    %v1037 = vsel %vm1021, %v1029, %v1036
    %v1038 = vrot.slane %v1033, 4
    %v1040 = vshrl.u32 %v1018, 16
    %v1042 = vrot.slane %v1040, 7
    %v1043 = vshll.u32 %v1018, 16
    %v1045 = vor.u32 %v1042, %v1043
    %v1046 = vrot.slane %v1042, 4
    %v1048 = vshrl.u32 %v1019, 16
    %v1050 = vrot.slane %v1048, 7
    %v1051 = vshll.u32 %v1019, 16
    %v1053 = vor.u32 %v1050, %v1051
    %v1054 = vsel %vm1021, %v1046, %v1053
    %v1055 = vrot.slane %v1050, 4
    %1056 = vrot.lane.b32.xlu0 %v1028, 8
    %v1057 = vpop.permute.xlu0 %1056
    %1058 = vrot.lane.b32.xlu0 %v1037, 8
    %v1059 = vpop.permute.xlu0 %1058
    %1060 = vrot.lane.b32.xlu0 %v1038, 8
    %v1061 = vpop.permute.xlu0 %1060
    %1062 = vrot.lane.b32.xlu0 %v1045, 8
    %v1063 = vpop.permute.xlu0 %1062
    %1064 = vrot.lane.b32.xlu0 %v1054, 8
    %v1065 = vpop.permute.xlu0 %1064
    %1066 = vrot.lane.b32.xlu0 %v1055, 8
    %v1067 = vpop.permute.xlu0 %1066
    %v1068 = vrot.slane %v1057, 4
    %v1069 = vrot.slane %v1059, 4
    %v1070 = vrot.slane %v1061, 4
    %v1071 = vrot.slane %v1063, 4
    %v1072 = vrot.slane %v1065, 4
    %v1073 = vrot.slane %v1067, 4
    %vm1074 = vcmask 64512
    %v1075 = vsel %vm1074, %v1068, %v1057
    %v1076 = vsel %vm1074, %v1069, %v1059
    %v1077 = vsel %vm1074, %v1070, %v1061
    %v1078 = vsel %vm1074, %v1071, %v1063
    %v1079 = vsel %vm1074, %v1072, %v1065
    %v1080 = vsel %vm1074, %v1073, %v1067
    %vm1087 = vcmask 1043520
    %vm1088 = vmand %vm1087, %vm989
    %vm1089 = vcmask 64516
    %vm1090 = vmand %vm1089, %vm991
    %vm1091 = vmor %vm1090, %vm1088
    %v1092 = vld [vmem:[#allocation2] sm:$0xff]
    %v1093 = vsel %vm1091, %v1075, %v1092
    %1094 = vst [vmem:[#allocation2] sm:$0xff] %v1093
    %vm1095 = vcmask 1043520
    %vm1096 = vcmask 64516
    %vm1097 = vmor %vm1096, %vm1095
    %1098 = vst.msk [vmem:[#allocation2 + $0x8] sm:$0xff] %vm1097, %v1076
    %vm1099 = vcmask 1040448
    %vm1100 = vmand %vm1099, %vm977
    %vm1101 = vcmask 61444
    %vm1102 = vmand %vm1101, %vm980
    %vm1103 = vmor %vm1102, %vm1100
    %v1104 = vld [vmem:[#allocation2 + $0x10] sm:$0x11]
    %v1105 = vsel %vm1103, %v1077, %v1104
    %1106 = vst [vmem:[#allocation2 + $0x10] sm:$0x11] %v1105
    %v1107 = vld [vmem:[#allocation2 + $0x18] sm:$0xff]
    %v1108 = vsel %vm1091, %v1078, %v1107
    %1109 = vst [vmem:[#allocation2 + $0x18] sm:$0xff] %v1108
    %1110 = vst.msk [vmem:[#allocation2 + $0x20] sm:$0xff] %vm1097, %v1079
    %v1111 = vld [vmem:[#allocation2 + $0x28] sm:$0x11]
    %v1112 = vsel %vm1103, %v1080, %v1111
    %1113 = vst [vmem:[#allocation2 + $0x28] sm:$0x11] %v1112
    %v1114 = vld [vmem:[#allocation2] sm:$0xf]
    %v1115 = vld [vmem:[#allocation2 + $0x8] sm:$0xf]
    %v1116 = vld [vmem:[#allocation2 + $0x18] sm:$0xf]
    %v1117 = vld [vmem:[#allocation2 + $0x20] sm:$0xf]
    %v1118 = vld [vmem:[#allocation8] sm:$0xf]
    %v1119 = vld [vmem:[#allocation8 + $0x4] sm:$0xf]
    %v1120 = vld [vmem:[#allocation8 + $0x8] sm:$0xf]
    %v1121 = vld [vmem:[#allocation8 + $0xc] sm:$0xf]
    %v1122 = vld [vmem:[#allocation8 + $0x10] sm:$0xf]
    %v1123 = vld [vmem:[#allocation8 + $0x14] sm:$0xf]
    %v1124 = vld [vmem:[#allocation8 + $0x18] sm:$0xf]
    %v1125 = vld [vmem:[#allocation8 + $0x1c] sm:$0xf]
    %v1126 = vld [vmem:[#allocation8 + $0x20] sm:$0xf]
    %v1127 = vld [vmem:[#allocation8 + $0x24] sm:$0xf]
    %v1128 = vld [vmem:[#allocation8 + $0x28] sm:$0xf]
    %v1129 = vld [vmem:[#allocation8 + $0x2c] sm:$0xf]
    %v1130 = vld [vmem:[#allocation8 + $0x30] sm:$0xf]
    %v1131 = vld [vmem:[#allocation8 + $0x34] sm:$0xf]
    %v1132 = vld [vmem:[#allocation8 + $0x38] sm:$0xf]
    %v1133 = vld [vmem:[#allocation8 + $0x3c] sm:$0xf]
    %v1134 = vld [vmem:[#allocation2] sm:$0xff]
    %v1135 = vld [vmem:[#allocation2 + $0x8] sm:$0xff]
    %v1136 = vld [vmem:[#allocation2 + $0x18] sm:$0xff]
    %v1137 = vld [vmem:[#allocation2 + $0x20] sm:$0xff]
    %s1138 = scalar_lea.vmem [#allocation8], 64
    %v1139 = vld [vmem:[%s1138] sm:$0xf]
    %v1140 = vld [vmem:[%s1138 + $0x4] sm:$0xf]
    %v1141 = vld [vmem:[%s1138 + $0x8] sm:$0xf]
    %v1142 = vld [vmem:[%s1138 + $0xc] sm:$0xf]
    %v1143 = vld [vmem:[%s1138 + $0x10] sm:$0xf]
    %v1144 = vld [vmem:[%s1138 + $0x14] sm:$0xf]
    %v1145 = vld [vmem:[%s1138 + $0x18] sm:$0xf]
    %v1146 = vld [vmem:[%s1138 + $0x1c] sm:$0xf]
    %v1147 = vld [vmem:[%s1138 + $0x20] sm:$0xf]
    %v1148 = vld [vmem:[%s1138 + $0x24] sm:$0xf]
    %v1149 = vld [vmem:[%s1138 + $0x28] sm:$0xf]
    %v1150 = vld [vmem:[%s1138 + $0x2c] sm:$0xf]
    %v1151 = vld [vmem:[%s1138 + $0x30] sm:$0xf]
    %v1152 = vld [vmem:[%s1138 + $0x34] sm:$0xf]
    %v1153 = vld [vmem:[%s1138 + $0x38] sm:$0xf]
    %v1154 = vld [vmem:[%s1138 + $0x3c] sm:$0xf]
    %v1159 = vunpack.c.l.b16 %v1134
    %v1160 = vunpack.c.h.b16 %v1134
    %v1161 = vunpack.c.l.b16 %v1135
    %v1162 = vunpack.c.h.b16 %v1135
    %v1163 = vunpack.c.l.b16 %v1136
    %v1164 = vunpack.c.h.b16 %v1136
    %v1165 = vunpack.c.l.b16 %v1137
    %v1166 = vunpack.c.h.b16 %v1137
    %v1167 = vpack.c.b16 %v1161, %v1159
    %v1168 = vpack.c.b16 %v1162, %v1160
    %v1169 = vpack.c.b16 %v1165, %v1163
    %v1170 = vpack.c.b16 %v1166, %v1164
    %1171 = vrot.lane.b32.xlu0 %v1167, 120
    %v1172 = vpop.permute.xlu0 %1171
    %1173 = vrot.lane.b32.xlu0 %v1168, 120
    %v1174 = vpop.permute.xlu0 %1173
    %1175 = vrot.lane.b32.xlu0 %v1169, 120
    %v1176 = vpop.permute.xlu0 %1175
    %1177 = vrot.lane.b32.xlu0 %v1170, 120
    %v1178 = vpop.permute.xlu0 %1177
    %vm1179 = vcmask 982016
    %v1180 = vsel %vm1179, %v1172, %v1174
    %v1181 = vsel %vm1179, %v1176, %v1178
    %v1200 = vunpack.c.l.b16 %v1139
    %v1201 = vunpack.c.l.b16 %v1140
    %v1202 = vunpack.c.l.b16 %v1141
    %v1203 = vunpack.c.l.b16 %v1142
    %v1204 = vunpack.c.l.b16 %v1143
    %v1205 = vunpack.c.l.b16 %v1144
    %v1206 = vunpack.c.l.b16 %v1145
    %v1207 = vunpack.c.l.b16 %v1146
    %v1208 = vunpack.c.l.b16 %v1147
    %v1209 = vunpack.c.l.b16 %v1148
    %v1210 = vunpack.c.l.b16 %v1149
    %v1211 = vunpack.c.l.b16 %v1150
    %v1212 = vunpack.c.l.b16 %v1151
    %v1213 = vunpack.c.l.b16 %v1152
    %v1214 = vunpack.c.l.b16 %v1153
    %v1215 = vunpack.c.l.b16 %v1154
    %v1216 = vpack.c.b16 %v1201, %v1200
    %v1217 = vpack.c.b16 %v1203, %v1202
    %v1218 = vpack.c.b16 %v1205, %v1204
    %v1219 = vpack.c.b16 %v1207, %v1206
    %v1220 = vpack.c.b16 %v1209, %v1208
    %v1221 = vpack.c.b16 %v1211, %v1210
    %v1222 = vpack.c.b16 %v1213, %v1212
    %v1223 = vpack.c.b16 %v1215, %v1214
    %1232 = vmatpush.bf16.msra.mxu0 %v1223
    %1233 = vmatpush.bf16.msra.mxu0 %v1222
    %1234 = vmatpush.bf16.msra.mxu0 %v1221
    %1235 = vmatpush.bf16.msra.mxu0 %v1220
    %1236 = vmatpush.bf16.msra.mxu0 %v1219
    %1237 = vmatpush.bf16.msra.mxu0 %v1218
    %1238 = vmatpush.bf16.msra.mxu0 %v1217
    %1239 = vmatpush.bf16.msra.mxu0 %v1216
    %1240 = vmatmul.bf16.gmra.mxu0 %v1180
    %v1241 = vpop.f32.mrf.mxu0
    %v1242 = vadd.f32 0.0, %v1241
    %v1243 = vpop.f32.mrf.mxu0
    %v1244 = vadd.f32 0.0, %v1243
    %1245 = vmatmul.bf16.gmra.mxu0 %v1181
    %v1246 = vpop.f32.mrf.mxu0
    %v1247 = vadd.f32 0.0, %v1246
    %v1248 = vpop.f32.mrf.mxu0
    %v1249 = vadd.f32 0.0, %v1248
    %1250 = vdwg.mxu0
    %v1255 = vunpack.c.l.b16 %v1114
    %v1256 = vunpack.c.l.b16 %v1115
    %v1257 = vunpack.c.l.b16 %v1116
    %v1258 = vunpack.c.l.b16 %v1117
    %v1259 = vpack.c.b16 %v1256, %v1255
    %v1260 = vpack.c.b16 %v1258, %v1257
    %v1279 = vunpack.c.l.b16 %v1118
    %v1280 = vunpack.c.l.b16 %v1119
    %v1281 = vunpack.c.l.b16 %v1120
    %v1282 = vunpack.c.l.b16 %v1121
    %v1283 = vunpack.c.l.b16 %v1122
    %v1284 = vunpack.c.l.b16 %v1123
    %v1285 = vunpack.c.l.b16 %v1124
    %v1286 = vunpack.c.l.b16 %v1125
    %v1287 = vunpack.c.l.b16 %v1126
    %v1288 = vunpack.c.l.b16 %v1127
    %v1289 = vunpack.c.l.b16 %v1128
    %v1290 = vunpack.c.l.b16 %v1129
    %v1291 = vunpack.c.l.b16 %v1130
    %v1292 = vunpack.c.l.b16 %v1131
    %v1293 = vunpack.c.l.b16 %v1132
    %v1294 = vunpack.c.l.b16 %v1133
    %v1295 = vpack.c.b16 %v1280, %v1279
    %v1296 = vpack.c.b16 %v1282, %v1281
    %v1297 = vpack.c.b16 %v1284, %v1283
    %v1298 = vpack.c.b16 %v1286, %v1285
    %v1299 = vpack.c.b16 %v1288, %v1287
    %v1300 = vpack.c.b16 %v1290, %v1289
    %v1301 = vpack.c.b16 %v1292, %v1291
    %v1302 = vpack.c.b16 %v1294, %v1293
    %1311 = vmatpush.bf16.msra.mxu0 %v1302
    %1312 = vmatpush.bf16.msra.mxu0 %v1301
    %1313 = vmatpush.bf16.msra.mxu0 %v1300
    %1314 = vmatpush.bf16.msra.mxu0 %v1299
    %1315 = vmatpush.bf16.msra.mxu0 %v1298
    %1316 = vmatpush.bf16.msra.mxu0 %v1297
    %1317 = vmatpush.bf16.msra.mxu0 %v1296
    %1318 = vmatpush.bf16.msra.mxu0 %v1295
    %1319 = vmatmul.bf16.gmra.mxu0 %v1259
    %v1320 = vpop.f32.mrf.mxu0
    %v1321 = vadd.f32 %v1242, %v1320
    %v1322 = vpop.f32.mrf.mxu0
    %v1323 = vadd.f32 %v1244, %v1322
    %1324 = vmatmul.bf16.gmra.mxu0 %v1260
    %v1325 = vpop.f32.mrf.mxu0
    %v1326 = vadd.f32 %v1247, %v1325
    %v1327 = vpop.f32.mrf.mxu0
    %v1328 = vadd.f32 %v1249, %v1327
    %1329 = vdwg.mxu0
    %s1330 = scalar_lea.vmem [#allocation8], 128
    %v1331 = vld [vmem:[%s1330] sm:$0xf]
    %v1332 = vld [vmem:[%s1330 + $0x4] sm:$0xf]
    %v1333 = vld [vmem:[%s1330 + $0x8] sm:$0xf]
    %v1334 = vld [vmem:[%s1330 + $0xc] sm:$0xf]
    %v1335 = vld [vmem:[%s1330 + $0x10] sm:$0xf]
    %v1336 = vld [vmem:[%s1330 + $0x14] sm:$0xf]
    %v1337 = vld [vmem:[%s1330 + $0x18] sm:$0xf]
    %v1338 = vld [vmem:[%s1330 + $0x1c] sm:$0xf]
    %v1339 = vld [vmem:[%s1330 + $0x20] sm:$0xf]
    %v1340 = vld [vmem:[%s1330 + $0x24] sm:$0xf]
    %v1341 = vld [vmem:[%s1330 + $0x28] sm:$0xf]
    %v1342 = vld [vmem:[%s1330 + $0x2c] sm:$0xf]
    %v1343 = vld [vmem:[%s1330 + $0x30] sm:$0xf]
    %v1344 = vld [vmem:[%s1330 + $0x34] sm:$0xf]
    %v1345 = vld [vmem:[%s1330 + $0x38] sm:$0xf]
    %v1346 = vld [vmem:[%s1330 + $0x3c] sm:$0xf]
    %1347 = vrot.lane.b32.xlu0 %v1167, 112
    %v1348 = vpop.permute.xlu0 %1347
    %1349 = vrot.lane.b32.xlu0 %v1168, 112
    %v1350 = vpop.permute.xlu0 %1349
    %1351 = vrot.lane.b32.xlu0 %v1169, 112
    %v1352 = vpop.permute.xlu0 %1351
    %1353 = vrot.lane.b32.xlu0 %v1170, 112
    %v1354 = vpop.permute.xlu0 %1353
    %vm1355 = vcmask 916480
    %v1356 = vsel %vm1355, %v1348, %v1350
    %v1357 = vsel %vm1355, %v1352, %v1354
    %v1376 = vunpack.c.l.b16 %v1331
    %v1377 = vunpack.c.l.b16 %v1332
    %v1378 = vunpack.c.l.b16 %v1333
    %v1379 = vunpack.c.l.b16 %v1334
    %v1380 = vunpack.c.l.b16 %v1335
    %v1381 = vunpack.c.l.b16 %v1336
    %v1382 = vunpack.c.l.b16 %v1337
    %v1383 = vunpack.c.l.b16 %v1338
    %v1384 = vunpack.c.l.b16 %v1339
    %v1385 = vunpack.c.l.b16 %v1340
    %v1386 = vunpack.c.l.b16 %v1341
    %v1387 = vunpack.c.l.b16 %v1342
    %v1388 = vunpack.c.l.b16 %v1343
    %v1389 = vunpack.c.l.b16 %v1344
    %v1390 = vunpack.c.l.b16 %v1345
    %v1391 = vunpack.c.l.b16 %v1346
    %v1392 = vpack.c.b16 %v1377, %v1376
    %v1393 = vpack.c.b16 %v1379, %v1378
    %v1394 = vpack.c.b16 %v1381, %v1380
    %v1395 = vpack.c.b16 %v1383, %v1382
    %v1396 = vpack.c.b16 %v1385, %v1384
    %v1397 = vpack.c.b16 %v1387, %v1386
    %v1398 = vpack.c.b16 %v1389, %v1388
    %v1399 = vpack.c.b16 %v1391, %v1390
    %1408 = vmatpush.bf16.msra.mxu0 %v1399
    %1409 = vmatpush.bf16.msra.mxu0 %v1398
    %1410 = vmatpush.bf16.msra.mxu0 %v1397
    %1411 = vmatpush.bf16.msra.mxu0 %v1396
    %1412 = vmatpush.bf16.msra.mxu0 %v1395
    %1413 = vmatpush.bf16.msra.mxu0 %v1394
    %1414 = vmatpush.bf16.msra.mxu0 %v1393
    %1415 = vmatpush.bf16.msra.mxu0 %v1392
    %1416 = vmatmul.bf16.gmra.mxu0 %v1356
    %v1417 = vpop.f32.mrf.mxu0
    %v1418 = vadd.f32 0.0, %v1417
    %v1419 = vpop.f32.mrf.mxu0
    %v1420 = vadd.f32 0.0, %v1419
    %1421 = vmatmul.bf16.gmra.mxu0 %v1357
    %v1422 = vpop.f32.mrf.mxu0
    %v1423 = vadd.f32 0.0, %v1422
    %v1424 = vpop.f32.mrf.mxu0
    %v1425 = vadd.f32 0.0, %v1424
    %1426 = vdwg.mxu0
    %v1427 = vadd.f32 %v1321, %v1418
    %v1428 = vadd.f32 %v1323, %v1420
    %v1429 = vadd.f32 %v1326, %v1423
    %v1430 = vadd.f32 %v1328, %v1425
    %v1431 = vld [vmem:[#allocation2] sm:$0xf]
    %v1432 = vld [vmem:[#allocation2 + $0x8] sm:$0xf]
    %v1433 = vld [vmem:[#allocation2 + $0x10] sm:$0x1]
    %v1434 = vld [vmem:[#allocation2 + $0x18] sm:$0xf]
    %v1435 = vld [vmem:[#allocation2 + $0x20] sm:$0xf]
    %v1436 = vld [vmem:[#allocation2 + $0x28] sm:$0x1]
    %vm1437 = vsmask.f32 3328
    %vm1438 = vsmask.f32 7440
    %vm1439 = vmor %vm1437, %vm1438
    %v1441 = vshrl.u32 %v1431, 16
    %v1443 = vrot.slane %v1441, 4
    %v1444 = vshll.u32 %v1431, 16
    %v1446 = vrot.slane %v1444, 5
    %v1447 = vor.u32 %v1443, %v1446
    %v1448 = vrot.slane %v1447, 4
    %v1450 = vshll.u32 %v1432, 16
    %v1452 = vrot.slane %v1450, 5
    %v1453 = vsel %vm1439, %v1448, %v1452
    %v1454 = vshrl.u32 %v1432, 16
    %v1456 = vrot.slane %v1454, 4
    %v1457 = vor.u32 %v1456, %v1452
    %v1458 = vrot.slane %v1457, 4
    %v1460 = vshll.u32 %v1433, 16
    %v1462 = vrot.slane %v1460, 5
    %v1463 = vsel %vm1439, %v1458, %v1462
    %v1465 = vshrl.u32 %v1434, 16
    %v1467 = vrot.slane %v1465, 4
    %v1468 = vshll.u32 %v1434, 16
    %v1470 = vrot.slane %v1468, 5
    %v1471 = vor.u32 %v1467, %v1470
    %v1472 = vrot.slane %v1471, 4
    %v1474 = vshll.u32 %v1435, 16
    %v1476 = vrot.slane %v1474, 5
    %v1477 = vsel %vm1439, %v1472, %v1476
    %v1478 = vshrl.u32 %v1435, 16
    %v1480 = vrot.slane %v1478, 4
    %v1481 = vor.u32 %v1480, %v1476
    %v1482 = vrot.slane %v1481, 4
    %v1484 = vshll.u32 %v1436, 16
    %v1486 = vrot.slane %v1484, 5
    %v1487 = vsel %vm1439, %v1482, %v1486
    %s1488 = scalar_lea.vmem [#allocation8], 192
    %v1489 = vld [vmem:[%s1488] sm:$0xf]
    %v1490 = vld [vmem:[%s1488 + $0x4] sm:$0xf]
    %v1491 = vld [vmem:[%s1488 + $0x8] sm:$0xf]
    %v1492 = vld [vmem:[%s1488 + $0xc] sm:$0xf]
    %v1493 = vld [vmem:[%s1488 + $0x10] sm:$0xf]
    %v1494 = vld [vmem:[%s1488 + $0x14] sm:$0xf]
    %v1495 = vld [vmem:[%s1488 + $0x18] sm:$0xf]
    %v1496 = vld [vmem:[%s1488 + $0x1c] sm:$0xf]
    %v1497 = vld [vmem:[%s1488 + $0x20] sm:$0xf]
    %v1498 = vld [vmem:[%s1488 + $0x24] sm:$0xf]
    %v1499 = vld [vmem:[%s1488 + $0x28] sm:$0xf]
    %v1500 = vld [vmem:[%s1488 + $0x2c] sm:$0xf]
    %v1501 = vld [vmem:[%s1488 + $0x30] sm:$0xf]
    %v1502 = vld [vmem:[%s1488 + $0x34] sm:$0xf]
    %v1503 = vld [vmem:[%s1488 + $0x38] sm:$0xf]
    %v1504 = vld [vmem:[%s1488 + $0x3c] sm:$0xf]
    %v1505 = vunpack.c.l.b16 %v1453
    %v1506 = vunpack.c.l.b16 %v1463
    %v1507 = vunpack.c.l.b16 %v1477
    %v1508 = vunpack.c.l.b16 %v1487
    %v1509 = vpack.c.b16 %v1506, %v1505
    %v1510 = vpack.c.b16 %v1508, %v1507
    %v1529 = vunpack.c.l.b16 %v1489
    %v1530 = vunpack.c.l.b16 %v1490
    %v1531 = vunpack.c.l.b16 %v1491
    %v1532 = vunpack.c.l.b16 %v1492
    %v1533 = vunpack.c.l.b16 %v1493
    %v1534 = vunpack.c.l.b16 %v1494
    %v1535 = vunpack.c.l.b16 %v1495
    %v1536 = vunpack.c.l.b16 %v1496
    %v1537 = vunpack.c.l.b16 %v1497
    %v1538 = vunpack.c.l.b16 %v1498
    %v1539 = vunpack.c.l.b16 %v1499
    %v1540 = vunpack.c.l.b16 %v1500
    %v1541 = vunpack.c.l.b16 %v1501
    %v1542 = vunpack.c.l.b16 %v1502
    %v1543 = vunpack.c.l.b16 %v1503
    %v1544 = vunpack.c.l.b16 %v1504
    %v1545 = vpack.c.b16 %v1530, %v1529
    %v1546 = vpack.c.b16 %v1532, %v1531
    %v1547 = vpack.c.b16 %v1534, %v1533
    %v1548 = vpack.c.b16 %v1536, %v1535
    %v1549 = vpack.c.b16 %v1538, %v1537
    %v1550 = vpack.c.b16 %v1540, %v1539
    %v1551 = vpack.c.b16 %v1542, %v1541
    %v1552 = vpack.c.b16 %v1544, %v1543
    %1561 = vmatpush.bf16.msra.mxu0 %v1552
    %1562 = vmatpush.bf16.msra.mxu0 %v1551
    %1563 = vmatpush.bf16.msra.mxu0 %v1550
    %1564 = vmatpush.bf16.msra.mxu0 %v1549
    %1565 = vmatpush.bf16.msra.mxu0 %v1548
    %1566 = vmatpush.bf16.msra.mxu0 %v1547
    %1567 = vmatpush.bf16.msra.mxu0 %v1546
    %1568 = vmatpush.bf16.msra.mxu0 %v1545
    %1569 = vmatmul.bf16.gmra.mxu0 %v1509
    %v1570 = vpop.f32.mrf.mxu0
    %v1571 = vadd.f32 0.0, %v1570
    %v1572 = vpop.f32.mrf.mxu0
    %v1573 = vadd.f32 0.0, %v1572
    %1574 = vmatmul.bf16.gmra.mxu0 %v1510
    %v1575 = vpop.f32.mrf.mxu0
    %v1576 = vadd.f32 0.0, %v1575
    %v1577 = vpop.f32.mrf.mxu0
    %v1578 = vadd.f32 0.0, %v1577
    %1579 = vdwg.mxu0
    %v1580 = vadd.f32 %v1427, %v1571
    %v1581 = vadd.f32 %v1428, %v1573
    %v1582 = vadd.f32 %v1429, %v1576
    %v1583 = vadd.f32 %v1430, %v1578
    %v1584 = vld [vmem:[#allocation2] sm:$0xff]
    %v1585 = vld [vmem:[#allocation2 + $0x8] sm:$0xff]
    %v1586 = vld [vmem:[#allocation2 + $0x10] sm:$0x11]
    %v1587 = vld [vmem:[#allocation2 + $0x18] sm:$0xff]
    %v1588 = vld [vmem:[#allocation2 + $0x20] sm:$0xff]
    %v1589 = vld [vmem:[#allocation2 + $0x28] sm:$0x11]
    %v1591 = vshrl.u32 %v1584, 16
    %v1593 = vrot.slane %v1591, 4
    %v1594 = vshll.u32 %v1584, 16
    %v1596 = vrot.slane %v1594, 5
    %v1597 = vor.u32 %v1593, %v1596
    %v1598 = vrot.slane %v1597, 4
    %v1600 = vshll.u32 %v1585, 16
    %v1602 = vrot.slane %v1600, 5
    %v1603 = vsel %vm1439, %v1598, %v1602
    %v1604 = vshrl.u32 %v1585, 16
    %v1606 = vrot.slane %v1604, 4
    %v1607 = vor.u32 %v1606, %v1602
    %v1608 = vrot.slane %v1607, 4
    %v1610 = vshll.u32 %v1586, 16
    %v1612 = vrot.slane %v1610, 5
    %v1613 = vsel %vm1439, %v1608, %v1612
    %v1615 = vshrl.u32 %v1587, 16
    %v1617 = vrot.slane %v1615, 4
    %v1618 = vshll.u32 %v1587, 16
    %v1620 = vrot.slane %v1618, 5
    %v1621 = vor.u32 %v1617, %v1620
    %v1622 = vrot.slane %v1621, 4
    %v1624 = vshll.u32 %v1588, 16
    %v1626 = vrot.slane %v1624, 5
    %v1627 = vsel %vm1439, %v1622, %v1626
    %v1628 = vshrl.u32 %v1588, 16
    %v1630 = vrot.slane %v1628, 4
    %v1631 = vor.u32 %v1630, %v1626
    %v1632 = vrot.slane %v1631, 4
    %v1634 = vshll.u32 %v1589, 16
    %v1636 = vrot.slane %v1634, 5
    %v1637 = vsel %vm1439, %v1632, %v1636
    %s1638 = scalar_lea.vmem [#allocation8], 256
    %v1639 = vld [vmem:[%s1638] sm:$0xf]
    %v1640 = vld [vmem:[%s1638 + $0x4] sm:$0xf]
    %v1641 = vld [vmem:[%s1638 + $0x8] sm:$0xf]
    %v1642 = vld [vmem:[%s1638 + $0xc] sm:$0xf]
    %v1643 = vld [vmem:[%s1638 + $0x10] sm:$0xf]
    %v1644 = vld [vmem:[%s1638 + $0x14] sm:$0xf]
    %v1645 = vld [vmem:[%s1638 + $0x18] sm:$0xf]
    %v1646 = vld [vmem:[%s1638 + $0x1c] sm:$0xf]
    %v1647 = vld [vmem:[%s1638 + $0x20] sm:$0xf]
    %v1648 = vld [vmem:[%s1638 + $0x24] sm:$0xf]
    %v1649 = vld [vmem:[%s1638 + $0x28] sm:$0xf]
    %v1650 = vld [vmem:[%s1638 + $0x2c] sm:$0xf]
    %v1651 = vld [vmem:[%s1638 + $0x30] sm:$0xf]
    %v1652 = vld [vmem:[%s1638 + $0x34] sm:$0xf]
    %v1653 = vld [vmem:[%s1638 + $0x38] sm:$0xf]
    %v1654 = vld [vmem:[%s1638 + $0x3c] sm:$0xf]
    %v1655 = vunpack.c.l.b16 %v1603
    %v1656 = vunpack.c.h.b16 %v1603
    %v1657 = vunpack.c.l.b16 %v1613
    %v1658 = vunpack.c.h.b16 %v1613
    %v1659 = vunpack.c.l.b16 %v1627
    %v1660 = vunpack.c.h.b16 %v1627
    %v1661 = vunpack.c.l.b16 %v1637
    %v1662 = vunpack.c.h.b16 %v1637
    %v1663 = vpack.c.b16 %v1657, %v1655
    %v1664 = vpack.c.b16 %v1658, %v1656
    %v1665 = vpack.c.b16 %v1661, %v1659
    %v1666 = vpack.c.b16 %v1662, %v1660
    %1667 = vrot.lane.b32.xlu0 %v1663, 120
    %v1668 = vpop.permute.xlu0 %1667
    %1669 = vrot.lane.b32.xlu0 %v1664, 120
    %v1670 = vpop.permute.xlu0 %1669
    %1671 = vrot.lane.b32.xlu0 %v1665, 120
    %v1672 = vpop.permute.xlu0 %1671
    %1673 = vrot.lane.b32.xlu0 %v1666, 120
    %v1674 = vpop.permute.xlu0 %1673
    %v1675 = vsel %vm1179, %v1668, %v1670
    %v1676 = vsel %vm1179, %v1672, %v1674
    %v1695 = vunpack.c.l.b16 %v1639
    %v1696 = vunpack.c.l.b16 %v1640
    %v1697 = vunpack.c.l.b16 %v1641
    %v1698 = vunpack.c.l.b16 %v1642
    %v1699 = vunpack.c.l.b16 %v1643
    %v1700 = vunpack.c.l.b16 %v1644
    %v1701 = vunpack.c.l.b16 %v1645
    %v1702 = vunpack.c.l.b16 %v1646
    %v1703 = vunpack.c.l.b16 %v1647
    %v1704 = vunpack.c.l.b16 %v1648
    %v1705 = vunpack.c.l.b16 %v1649
    %v1706 = vunpack.c.l.b16 %v1650
    %v1707 = vunpack.c.l.b16 %v1651
    %v1708 = vunpack.c.l.b16 %v1652
    %v1709 = vunpack.c.l.b16 %v1653
    %v1710 = vunpack.c.l.b16 %v1654
    %v1711 = vpack.c.b16 %v1696, %v1695
    %v1712 = vpack.c.b16 %v1698, %v1697
    %v1713 = vpack.c.b16 %v1700, %v1699
    %v1714 = vpack.c.b16 %v1702, %v1701
    %v1715 = vpack.c.b16 %v1704, %v1703
    %v1716 = vpack.c.b16 %v1706, %v1705
    %v1717 = vpack.c.b16 %v1708, %v1707
    %v1718 = vpack.c.b16 %v1710, %v1709
    %1727 = vmatpush.bf16.msra.mxu0 %v1718
    %1728 = vmatpush.bf16.msra.mxu0 %v1717
    %1729 = vmatpush.bf16.msra.mxu0 %v1716
    %1730 = vmatpush.bf16.msra.mxu0 %v1715
    %1731 = vmatpush.bf16.msra.mxu0 %v1714
    %1732 = vmatpush.bf16.msra.mxu0 %v1713
    %1733 = vmatpush.bf16.msra.mxu0 %v1712
    %1734 = vmatpush.bf16.msra.mxu0 %v1711
    %1735 = vmatmul.bf16.gmra.mxu0 %v1675
    %v1736 = vpop.f32.mrf.mxu0
    %v1737 = vadd.f32 0.0, %v1736
    %v1738 = vpop.f32.mrf.mxu0
    %v1739 = vadd.f32 0.0, %v1738
    %1740 = vmatmul.bf16.gmra.mxu0 %v1676
    %v1741 = vpop.f32.mrf.mxu0
    %v1742 = vadd.f32 0.0, %v1741
    %v1743 = vpop.f32.mrf.mxu0
    %v1744 = vadd.f32 0.0, %v1743
    %1745 = vdwg.mxu0
    %v1746 = vadd.f32 %v1580, %v1737
    %v1747 = vadd.f32 %v1581, %v1739
    %v1748 = vadd.f32 %v1582, %v1742
    %v1749 = vadd.f32 %v1583, %v1744
    %s1750 = scalar_lea.vmem [#allocation8], 320
    %v1751 = vld [vmem:[%s1750] sm:$0xf]
    %v1752 = vld [vmem:[%s1750 + $0x4] sm:$0xf]
    %v1753 = vld [vmem:[%s1750 + $0x8] sm:$0xf]
    %v1754 = vld [vmem:[%s1750 + $0xc] sm:$0xf]
    %v1755 = vld [vmem:[%s1750 + $0x10] sm:$0xf]
    %v1756 = vld [vmem:[%s1750 + $0x14] sm:$0xf]
    %v1757 = vld [vmem:[%s1750 + $0x18] sm:$0xf]
    %v1758 = vld [vmem:[%s1750 + $0x1c] sm:$0xf]
    %v1759 = vld [vmem:[%s1750 + $0x20] sm:$0xf]
    %v1760 = vld [vmem:[%s1750 + $0x24] sm:$0xf]
    %v1761 = vld [vmem:[%s1750 + $0x28] sm:$0xf]
    %v1762 = vld [vmem:[%s1750 + $0x2c] sm:$0xf]
    %v1763 = vld [vmem:[%s1750 + $0x30] sm:$0xf]
    %v1764 = vld [vmem:[%s1750 + $0x34] sm:$0xf]
    %v1765 = vld [vmem:[%s1750 + $0x38] sm:$0xf]
    %v1766 = vld [vmem:[%s1750 + $0x3c] sm:$0xf]
    %1767 = vrot.lane.b32.xlu0 %v1663, 112
    %v1768 = vpop.permute.xlu0 %1767
    %1769 = vrot.lane.b32.xlu0 %v1664, 112
    %v1770 = vpop.permute.xlu0 %1769
    %1771 = vrot.lane.b32.xlu0 %v1665, 112
    %v1772 = vpop.permute.xlu0 %1771
    %1773 = vrot.lane.b32.xlu0 %v1666, 112
    %v1774 = vpop.permute.xlu0 %1773
    %v1775 = vsel %vm1355, %v1768, %v1770
    %v1776 = vsel %vm1355, %v1772, %v1774
    %v1795 = vunpack.c.l.b16 %v1751
    %v1796 = vunpack.c.l.b16 %v1752
    %v1797 = vunpack.c.l.b16 %v1753
    %v1798 = vunpack.c.l.b16 %v1754
    %v1799 = vunpack.c.l.b16 %v1755
    %v1800 = vunpack.c.l.b16 %v1756
    %v1801 = vunpack.c.l.b16 %v1757
    %v1802 = vunpack.c.l.b16 %v1758
    %v1803 = vunpack.c.l.b16 %v1759
    %v1804 = vunpack.c.l.b16 %v1760
    %v1805 = vunpack.c.l.b16 %v1761
    %v1806 = vunpack.c.l.b16 %v1762
    %v1807 = vunpack.c.l.b16 %v1763
    %v1808 = vunpack.c.l.b16 %v1764
    %v1809 = vunpack.c.l.b16 %v1765
    %v1810 = vunpack.c.l.b16 %v1766
    %v1811 = vpack.c.b16 %v1796, %v1795
    %v1812 = vpack.c.b16 %v1798, %v1797
    %v1813 = vpack.c.b16 %v1800, %v1799
    %v1814 = vpack.c.b16 %v1802, %v1801
    %v1815 = vpack.c.b16 %v1804, %v1803
    %v1816 = vpack.c.b16 %v1806, %v1805
    %v1817 = vpack.c.b16 %v1808, %v1807
    %v1818 = vpack.c.b16 %v1810, %v1809
    %1827 = vmatpush.bf16.msra.mxu0 %v1818
    %1828 = vmatpush.bf16.msra.mxu0 %v1817
    %1829 = vmatpush.bf16.msra.mxu0 %v1816
    %1830 = vmatpush.bf16.msra.mxu0 %v1815
    %1831 = vmatpush.bf16.msra.mxu0 %v1814
    %1832 = vmatpush.bf16.msra.mxu0 %v1813
    %1833 = vmatpush.bf16.msra.mxu0 %v1812
    %1834 = vmatpush.bf16.msra.mxu0 %v1811
    %1835 = vmatmul.bf16.gmra.mxu0 %v1775
    %v1836 = vpop.f32.mrf.mxu0
    %v1837 = vadd.f32 0.0, %v1836
    %v1838 = vpop.f32.mrf.mxu0
    %v1839 = vadd.f32 0.0, %v1838
    %1840 = vmatmul.bf16.gmra.mxu0 %v1776
    %v1841 = vpop.f32.mrf.mxu0
    %v1842 = vadd.f32 0.0, %v1841
    %v1843 = vpop.f32.mrf.mxu0
    %v1844 = vadd.f32 0.0, %v1843
    %1845 = vdwg.mxu0
    %v1846 = vadd.f32 %v1746, %v1837
    %v1847 = vadd.f32 %v1747, %v1839
    %v1848 = vadd.f32 %v1748, %v1842
    %v1849 = vadd.f32 %v1749, %v1844
    %v1850 = vld [vmem:[#allocation2] sm:$0xe]
    %v1851 = vld [vmem:[#allocation2 + $0x18] sm:$0xe]
    %vm1858 = vcmask 1042432
    %vm1859 = vcmask 1046532
    %vm1860 = vmor %vm1858, %vm1859
    %v1861 = vrot.slane %v1850, 5
    %v1862 = vrot.slane %v1861, 4
    %v1863 = vrot.slane %v1432, 5
    %v1864 = vsel %vm1860, %v1862, %v1863
    %v1865 = vrot.slane %v1863, 4
    %v1866 = vrot.slane %v1433, 5
    %v1867 = vsel %vm1860, %v1865, %v1866
    %v1868 = vrot.slane %v1851, 5
    %v1869 = vrot.slane %v1868, 4
    %v1870 = vrot.slane %v1435, 5
    %v1871 = vsel %vm1860, %v1869, %v1870
    %v1872 = vrot.slane %v1870, 4
    %v1873 = vrot.slane %v1436, 5
    %v1874 = vsel %vm1860, %v1872, %v1873
    %s1875 = scalar_lea.vmem [#allocation8], 384
    %v1876 = vld [vmem:[%s1875] sm:$0xf]
    %v1877 = vld [vmem:[%s1875 + $0x4] sm:$0xf]
    %v1878 = vld [vmem:[%s1875 + $0x8] sm:$0xf]
    %v1879 = vld [vmem:[%s1875 + $0xc] sm:$0xf]
    %v1880 = vld [vmem:[%s1875 + $0x10] sm:$0xf]
    %v1881 = vld [vmem:[%s1875 + $0x14] sm:$0xf]
    %v1882 = vld [vmem:[%s1875 + $0x18] sm:$0xf]
    %v1883 = vld [vmem:[%s1875 + $0x1c] sm:$0xf]
    %v1884 = vld [vmem:[%s1875 + $0x20] sm:$0xf]
    %v1885 = vld [vmem:[%s1875 + $0x24] sm:$0xf]
    %v1886 = vld [vmem:[%s1875 + $0x28] sm:$0xf]
    %v1887 = vld [vmem:[%s1875 + $0x2c] sm:$0xf]
    %v1888 = vld [vmem:[%s1875 + $0x30] sm:$0xf]
    %v1889 = vld [vmem:[%s1875 + $0x34] sm:$0xf]
    %v1890 = vld [vmem:[%s1875 + $0x38] sm:$0xf]
    %v1891 = vld [vmem:[%s1875 + $0x3c] sm:$0xf]
    %v1892 = vunpack.c.l.b16 %v1864
    %v1893 = vunpack.c.l.b16 %v1867
    %v1894 = vunpack.c.l.b16 %v1871
    %v1895 = vunpack.c.l.b16 %v1874
    %v1896 = vpack.c.b16 %v1893, %v1892
    %v1897 = vpack.c.b16 %v1895, %v1894
    %v1916 = vunpack.c.l.b16 %v1876
    %v1917 = vunpack.c.l.b16 %v1877
    %v1918 = vunpack.c.l.b16 %v1878
    %v1919 = vunpack.c.l.b16 %v1879
    %v1920 = vunpack.c.l.b16 %v1880
    %v1921 = vunpack.c.l.b16 %v1881
    %v1922 = vunpack.c.l.b16 %v1882
    %v1923 = vunpack.c.l.b16 %v1883
    %v1924 = vunpack.c.l.b16 %v1884
    %v1925 = vunpack.c.l.b16 %v1885
    %v1926 = vunpack.c.l.b16 %v1886
    %v1927 = vunpack.c.l.b16 %v1887
    %v1928 = vunpack.c.l.b16 %v1888
    %v1929 = vunpack.c.l.b16 %v1889
    %v1930 = vunpack.c.l.b16 %v1890
    %v1931 = vunpack.c.l.b16 %v1891
    %v1932 = vpack.c.b16 %v1917, %v1916
    %v1933 = vpack.c.b16 %v1919, %v1918
    %v1934 = vpack.c.b16 %v1921, %v1920
    %v1935 = vpack.c.b16 %v1923, %v1922
    %v1936 = vpack.c.b16 %v1925, %v1924
    %v1937 = vpack.c.b16 %v1927, %v1926
    %v1938 = vpack.c.b16 %v1929, %v1928
    %v1939 = vpack.c.b16 %v1931, %v1930
    %1948 = vmatpush.bf16.msra.mxu0 %v1939
    %1949 = vmatpush.bf16.msra.mxu0 %v1938
    %1950 = vmatpush.bf16.msra.mxu0 %v1937
    %1951 = vmatpush.bf16.msra.mxu0 %v1936
    %1952 = vmatpush.bf16.msra.mxu0 %v1935
    %1953 = vmatpush.bf16.msra.mxu0 %v1934
    %1954 = vmatpush.bf16.msra.mxu0 %v1933
    %1955 = vmatpush.bf16.msra.mxu0 %v1932
    %1956 = vmatmul.bf16.gmra.mxu0 %v1896
    %v1957 = vpop.f32.mrf.mxu0
    %v1958 = vadd.f32 0.0, %v1957
    %v1959 = vpop.f32.mrf.mxu0
    %v1960 = vadd.f32 0.0, %v1959
    %1961 = vmatmul.bf16.gmra.mxu0 %v1897
    %v1962 = vpop.f32.mrf.mxu0
    %v1963 = vadd.f32 0.0, %v1962
    %v1964 = vpop.f32.mrf.mxu0
    %v1965 = vadd.f32 0.0, %v1964
    %1966 = vdwg.mxu0
    %v1967 = vadd.f32 %v1846, %v1958
    %v1968 = vadd.f32 %v1847, %v1960
    %v1969 = vadd.f32 %v1848, %v1963
    %v1970 = vadd.f32 %v1849, %v1965
    %v1971 = vld [vmem:[#allocation2] sm:$0xee]
    %v1972 = vld [vmem:[#allocation2 + $0x18] sm:$0xee]
    %v1979 = vrot.slane %v1971, 5
    %v1980 = vrot.slane %v1979, 4
    %v1981 = vrot.slane %v1585, 5
    %v1982 = vsel %vm1860, %v1980, %v1981
    %v1983 = vrot.slane %v1981, 4
    %v1984 = vrot.slane %v1586, 5
    %v1985 = vsel %vm1860, %v1983, %v1984
    %v1986 = vrot.slane %v1972, 5
    %v1987 = vrot.slane %v1986, 4
    %v1988 = vrot.slane %v1588, 5
    %v1989 = vsel %vm1860, %v1987, %v1988
    %v1990 = vrot.slane %v1988, 4
    %v1991 = vrot.slane %v1589, 5
    %v1992 = vsel %vm1860, %v1990, %v1991
    %s1993 = scalar_lea.vmem [#allocation8], 448
    %v1994 = vld [vmem:[%s1993] sm:$0xf]
    %v1995 = vld [vmem:[%s1993 + $0x4] sm:$0xf]
    %v1996 = vld [vmem:[%s1993 + $0x8] sm:$0xf]
    %v1997 = vld [vmem:[%s1993 + $0xc] sm:$0xf]
    %v1998 = vld [vmem:[%s1993 + $0x10] sm:$0xf]
    %v1999 = vld [vmem:[%s1993 + $0x14] sm:$0xf]
    %v2000 = vld [vmem:[%s1993 + $0x18] sm:$0xf]
    %v2001 = vld [vmem:[%s1993 + $0x1c] sm:$0xf]
    %v2002 = vld [vmem:[%s1993 + $0x20] sm:$0xf]
    %v2003 = vld [vmem:[%s1993 + $0x24] sm:$0xf]
    %v2004 = vld [vmem:[%s1993 + $0x28] sm:$0xf]
    %v2005 = vld [vmem:[%s1993 + $0x2c] sm:$0xf]
    %v2006 = vld [vmem:[%s1993 + $0x30] sm:$0xf]
    %v2007 = vld [vmem:[%s1993 + $0x34] sm:$0xf]
    %v2008 = vld [vmem:[%s1993 + $0x38] sm:$0xf]
    %v2009 = vld [vmem:[%s1993 + $0x3c] sm:$0xf]
    %v2010 = vunpack.c.l.b16 %v1982
    %v2011 = vunpack.c.h.b16 %v1982
    %v2012 = vunpack.c.l.b16 %v1985
    %v2013 = vunpack.c.h.b16 %v1985
    %v2014 = vunpack.c.l.b16 %v1989
    %v2015 = vunpack.c.h.b16 %v1989
    %v2016 = vunpack.c.l.b16 %v1992
    %v2017 = vunpack.c.h.b16 %v1992
    %v2018 = vpack.c.b16 %v2012, %v2010
    %v2019 = vpack.c.b16 %v2013, %v2011
    %v2020 = vpack.c.b16 %v2016, %v2014
    %v2021 = vpack.c.b16 %v2017, %v2015
    %2022 = vrot.lane.b32.xlu0 %v2018, 120
    %v2023 = vpop.permute.xlu0 %2022
    %2024 = vrot.lane.b32.xlu0 %v2019, 120
    %v2025 = vpop.permute.xlu0 %2024
    %2026 = vrot.lane.b32.xlu0 %v2020, 120
    %v2027 = vpop.permute.xlu0 %2026
    %2028 = vrot.lane.b32.xlu0 %v2021, 120
    %v2029 = vpop.permute.xlu0 %2028
    %v2030 = vsel %vm1179, %v2023, %v2025
    %v2031 = vsel %vm1179, %v2027, %v2029
    %v2050 = vunpack.c.l.b16 %v1994
    %v2051 = vunpack.c.l.b16 %v1995
    %v2052 = vunpack.c.l.b16 %v1996
    %v2053 = vunpack.c.l.b16 %v1997
    %v2054 = vunpack.c.l.b16 %v1998
    %v2055 = vunpack.c.l.b16 %v1999
    %v2056 = vunpack.c.l.b16 %v2000
    %v2057 = vunpack.c.l.b16 %v2001
    %v2058 = vunpack.c.l.b16 %v2002
    %v2059 = vunpack.c.l.b16 %v2003
    %v2060 = vunpack.c.l.b16 %v2004
    %v2061 = vunpack.c.l.b16 %v2005
    %v2062 = vunpack.c.l.b16 %v2006
    %v2063 = vunpack.c.l.b16 %v2007
    %v2064 = vunpack.c.l.b16 %v2008
    %v2065 = vunpack.c.l.b16 %v2009
    %v2066 = vpack.c.b16 %v2051, %v2050
    %v2067 = vpack.c.b16 %v2053, %v2052
    %v2068 = vpack.c.b16 %v2055, %v2054
    %v2069 = vpack.c.b16 %v2057, %v2056
    %v2070 = vpack.c.b16 %v2059, %v2058
    %v2071 = vpack.c.b16 %v2061, %v2060
    %v2072 = vpack.c.b16 %v2063, %v2062
    %v2073 = vpack.c.b16 %v2065, %v2064
    %2082 = vmatpush.bf16.msra.mxu0 %v2073
    %2083 = vmatpush.bf16.msra.mxu0 %v2072
    %2084 = vmatpush.bf16.msra.mxu0 %v2071
    %2085 = vmatpush.bf16.msra.mxu0 %v2070
    %2086 = vmatpush.bf16.msra.mxu0 %v2069
    %2087 = vmatpush.bf16.msra.mxu0 %v2068
    %2088 = vmatpush.bf16.msra.mxu0 %v2067
    %2089 = vmatpush.bf16.msra.mxu0 %v2066
    %2090 = vmatmul.bf16.gmra.mxu0 %v2030
    %v2091 = vpop.f32.mrf.mxu0
    %v2092 = vadd.f32 0.0, %v2091
    %v2093 = vpop.f32.mrf.mxu0
    %v2094 = vadd.f32 0.0, %v2093
    %2095 = vmatmul.bf16.gmra.mxu0 %v2031
    %v2096 = vpop.f32.mrf.mxu0
    %v2097 = vadd.f32 0.0, %v2096
    %v2098 = vpop.f32.mrf.mxu0
    %v2099 = vadd.f32 0.0, %v2098
    %2100 = vdwg.mxu0
    %v2101 = vadd.f32 %v1967, %v2092
    %v2102 = vadd.f32 %v1968, %v2094
    %v2103 = vadd.f32 %v1969, %v2097
    %v2104 = vadd.f32 %v1970, %v2099
    %s2105 = scalar_lea.vmem [#allocation8], 512
    %v2106 = vld [vmem:[%s2105] sm:$0xf]
    %v2107 = vld [vmem:[%s2105 + $0x4] sm:$0xf]
    %v2108 = vld [vmem:[%s2105 + $0x8] sm:$0xf]
    %v2109 = vld [vmem:[%s2105 + $0xc] sm:$0xf]
    %v2110 = vld [vmem:[%s2105 + $0x10] sm:$0xf]
    %v2111 = vld [vmem:[%s2105 + $0x14] sm:$0xf]
    %v2112 = vld [vmem:[%s2105 + $0x18] sm:$0xf]
    %v2113 = vld [vmem:[%s2105 + $0x1c] sm:$0xf]
    %v2114 = vld [vmem:[%s2105 + $0x20] sm:$0xf]
    %v2115 = vld [vmem:[%s2105 + $0x24] sm:$0xf]
    %v2116 = vld [vmem:[%s2105 + $0x28] sm:$0xf]
    %v2117 = vld [vmem:[%s2105 + $0x2c] sm:$0xf]
    %v2118 = vld [vmem:[%s2105 + $0x30] sm:$0xf]
    %v2119 = vld [vmem:[%s2105 + $0x34] sm:$0xf]
    %v2120 = vld [vmem:[%s2105 + $0x38] sm:$0xf]
    %v2121 = vld [vmem:[%s2105 + $0x3c] sm:$0xf]
    %2122 = vrot.lane.b32.xlu0 %v2018, 112
    %v2123 = vpop.permute.xlu0 %2122
    %2124 = vrot.lane.b32.xlu0 %v2019, 112
    %v2125 = vpop.permute.xlu0 %2124
    %2126 = vrot.lane.b32.xlu0 %v2020, 112
    %v2127 = vpop.permute.xlu0 %2126
    %2128 = vrot.lane.b32.xlu0 %v2021, 112
    %v2129 = vpop.permute.xlu0 %2128
    %v2130 = vsel %vm1355, %v2123, %v2125
    %v2131 = vsel %vm1355, %v2127, %v2129
    %v2150 = vunpack.c.l.b16 %v2106
    %v2151 = vunpack.c.l.b16 %v2107
    %v2152 = vunpack.c.l.b16 %v2108
    %v2153 = vunpack.c.l.b16 %v2109
    %v2154 = vunpack.c.l.b16 %v2110
    %v2155 = vunpack.c.l.b16 %v2111
    %v2156 = vunpack.c.l.b16 %v2112
    %v2157 = vunpack.c.l.b16 %v2113
    %v2158 = vunpack.c.l.b16 %v2114
    %v2159 = vunpack.c.l.b16 %v2115
    %v2160 = vunpack.c.l.b16 %v2116
    %v2161 = vunpack.c.l.b16 %v2117
    %v2162 = vunpack.c.l.b16 %v2118
    %v2163 = vunpack.c.l.b16 %v2119
    %v2164 = vunpack.c.l.b16 %v2120
    %v2165 = vunpack.c.l.b16 %v2121
    %v2166 = vpack.c.b16 %v2151, %v2150
    %v2167 = vpack.c.b16 %v2153, %v2152
    %v2168 = vpack.c.b16 %v2155, %v2154
    %v2169 = vpack.c.b16 %v2157, %v2156
    %v2170 = vpack.c.b16 %v2159, %v2158
    %v2171 = vpack.c.b16 %v2161, %v2160
    %v2172 = vpack.c.b16 %v2163, %v2162
    %v2173 = vpack.c.b16 %v2165, %v2164
    %2182 = vmatpush.bf16.msra.mxu0 %v2173
    %2183 = vmatpush.bf16.msra.mxu0 %v2172
    %2184 = vmatpush.bf16.msra.mxu0 %v2171
    %2185 = vmatpush.bf16.msra.mxu0 %v2170
    %2186 = vmatpush.bf16.msra.mxu0 %v2169
    %2187 = vmatpush.bf16.msra.mxu0 %v2168
    %2188 = vmatpush.bf16.msra.mxu0 %v2167
    %2189 = vmatpush.bf16.msra.mxu0 %v2166
    %2190 = vmatmul.bf16.gmra.mxu0 %v2130
    %v2191 = vpop.f32.mrf.mxu0
    %v2192 = vadd.f32 0.0, %v2191
    %v2193 = vpop.f32.mrf.mxu0
    %v2194 = vadd.f32 0.0, %v2193
    %2195 = vmatmul.bf16.gmra.mxu0 %v2131
    %v2196 = vpop.f32.mrf.mxu0
    %v2197 = vadd.f32 0.0, %v2196
    %v2198 = vpop.f32.mrf.mxu0
    %v2199 = vadd.f32 0.0, %v2198
    %2200 = vdwg.mxu0
    %v2201 = vadd.f32 %v2101, %v2192
    %v2202 = vadd.f32 %v2102, %v2194
    %v2203 = vadd.f32 %v2103, %v2197
    %v2204 = vadd.f32 %v2104, %v2199
    %v2205 = vld [vmem:[%s7] sm:$0x1]
    %v2207 = vperm.slane %v2205, 0
    %v2209 = vadd.f32 %v2201, %v2207
    %v2210 = vadd.f32 %v2202, %v2207
    %v2211 = vadd.f32 %v2203, %v2207
    %v2212 = vadd.f32 %v2204, %v2207
    %v2213 = vld [vmem:[%s8] sm:$0x1]
    %v2214 = vld [vmem:[%s9] sm:$0x1]
    %v2215 = vadd.f32 %v2209, %v2210
    %v2216 = vadd.f32 %v2215, %v2211
    %v2217 = vadd.f32 %v2216, %v2212
    %v2218 = vrot.slane %v2217, 4
    %v2219 = vadd.f32 %v2217, %v2218
    %v2220 = vrot.slane %v2219, 2
    %v2221 = vadd.f32 %v2219, %v2220
    %v2222 = vrot.slane %v2221, 1
    %v2223 = vadd.f32 %v2221, %v2222
    %v2224 = vmul.f32 %v2209, %v2209
    %v2225 = vmul.f32 %v2210, %v2210
    %v2226 = vmul.f32 %v2211, %v2211
    %v2227 = vmul.f32 %v2212, %v2212
    %v2228 = vadd.f32 %v2224, %v2225
    %v2229 = vadd.f32 %v2228, %v2226
    %v2230 = vadd.f32 %v2229, %v2227
    %v2231 = vrot.slane %v2230, 4
    %v2232 = vadd.f32 %v2230, %v2231
    %v2233 = vrot.slane %v2232, 2
    %v2234 = vadd.f32 %v2232, %v2233
    %v2235 = vrot.slane %v2234, 1
    %v2236 = vadd.f32 %v2234, %v2235
    %2237 = vmatpush.msra.mxu0 %v118
    %2238 = vmatpush.msra.mxu0 %v117
    %2239 = vmatpush.msra.mxu0 %v116
    %2240 = vmatpush.msra.mxu0 %v115
    %2241 = vmatpush.msra.mxu0 %v114
    %2242 = vmatpush.msra.mxu0 %v113
    %2243 = vmatpush.msra.mxu0 %v112
    %2244 = vmatpush.msra.mxu0 %v111
    %2245 = vmatpush.msra.mxu0 %v110
    %2246 = vmatpush.msra.mxu0 %v109
    %2247 = vmatpush.msra.mxu0 %v108
    %2248 = vmatpush.msra.mxu0 %v107
    %2249 = vmatpush.msra.mxu0 %v106
    %2250 = vmatpush.msra.mxu0 %v105
    %2251 = vmatpush.msra.mxu0 %v104
    %2252 = vmatpush.msra.mxu0 %v103
    %2253 = vmatmul.f32.gmra.mxu0 %v2223
    %v2254 = vpop.f32.mrf.mxu0
    %v2255 = vadd.f32 0.0, %v2254
    %2256 = vdwg.mxu0
    %v2257 = vmul.f32 %v2255, 0.001953125
    %2258 = vmatpush.msra.mxu0 %v118
    %2259 = vmatpush.msra.mxu0 %v117
    %2260 = vmatpush.msra.mxu0 %v116
    %2261 = vmatpush.msra.mxu0 %v115
    %2262 = vmatpush.msra.mxu0 %v114
    %2263 = vmatpush.msra.mxu0 %v113
    %2264 = vmatpush.msra.mxu0 %v112
    %2265 = vmatpush.msra.mxu0 %v111
    %2266 = vmatpush.msra.mxu0 %v110
    %2267 = vmatpush.msra.mxu0 %v109
    %2268 = vmatpush.msra.mxu0 %v108
    %2269 = vmatpush.msra.mxu0 %v107
    %2270 = vmatpush.msra.mxu0 %v106
    %2271 = vmatpush.msra.mxu0 %v105
    %2272 = vmatpush.msra.mxu0 %v104
    %2273 = vmatpush.msra.mxu0 %v103
    %2274 = vmatmul.f32.gmra.mxu0 %v2236
    %v2275 = vpop.f32.mrf.mxu0
    %v2276 = vadd.f32 0.0, %v2275
    %2277 = vdwg.mxu0
    %v2278 = vmul.f32 %v2276, 0.001953125
    %v2279 = vmul.f32 %v2257, %v2257
    %v2280 = vsub.f32 %v2278, %v2279
    %v2281 = vperm.slane %v2257, 0
    %v2282 = vsub.f32 %v2209, %v2281
    %v2283 = vsub.f32 %v2210, %v2281
    %v2284 = vsub.f32 %v2211, %v2281
    %v2285 = vsub.f32 %v2212, %v2281
    %v2286 = vadd.f32 %v2280, 1e-05
    %v2287 = vrsqrt.pop %v2286
    %v2288 = vmul.f32 %v2287, %v2286
    %v2289 = vmul.f32 %v2288, %v2287
    %v2290 = vmul.f32 0.5, %v2289
    %v2291 = vsub.f32 1.5, %v2290
    %v2292 = vmul.f32 %v2287, %v2291
    %vm2293 = vweird.f32 %v2286
    %vm2294 = vweird.f32 %v2287
    %vm2295 = vmor %vm2293, %vm2294
    %v2296 = vsel %vm2295, %v2287, %v2292
    %v2297 = vperm.slane %v2296, 0
    %v2298 = vmul.f32 %v2282, %v2297
    %v2299 = vmul.f32 %v2283, %v2297
    %v2300 = vmul.f32 %v2284, %v2297
    %v2301 = vmul.f32 %v2285, %v2297
    %v2303 = vperm.slane %v2213, 0
    %v2305 = vmul.f32 %v2298, %v2303
    %v2306 = vmul.f32 %v2299, %v2303
    %v2307 = vmul.f32 %v2300, %v2303
    %v2308 = vmul.f32 %v2301, %v2303
    %v2310 = vperm.slane %v2214, 0
    %v2312 = vadd.f32 %v2305, %v2310
    %v2313 = vadd.f32 %v2306, %v2310
    %v2314 = vadd.f32 %v2307, %v2310
    %v2315 = vadd.f32 %v2308, %v2310
    %v2316 = vadd.f32 %v2312, %v865
    %v2317 = vadd.f32 %v2313, %v866
    %v2318 = vadd.f32 %v2314, %v867
    %v2319 = vadd.f32 %v2315, %v868
    %v2320 = vmax.f32 %v2316, 0.0
    %v2321 = vmax.f32 %v2317, 0.0
    %v2322 = vmax.f32 %v2318, 0.0
    %v2323 = vmax.f32 %v2319, 0.0
    %2324 = vst [vmem:[#allocation11] sm:$0xff] %v2320
    %2325 = vst [vmem:[#allocation11 + $0x8] sm:$0xff] %v2321
    %2326 = vst [vmem:[#allocation11 + $0x10] sm:$0xff] %v2322
    %2327 = vst [vmem:[#allocation11 + $0x18] sm:$0xff] %v2323
    // Predicated region
    $region62: #{tpu_custom_call.1} parent=1 // pred_check
      _
    $region63: #{tpu_custom_call.1} parent=1 // pred_check_branch
      %2329 = sbr.rel (0) target = $region65
    $region64: #{tpu_custom_call.1} parent=1 // pred_region
      %2331 = vsyncadd [#allocation5], 0
      %s2332 = sshll.u32 [#allocation11], 4
      %s2333 = int_to_ptr.vmem [resolvable:$true] %s2332
      %s2334 = sshll.u32 %s11, 4
      %s2335 = int_to_ptr.hbm [resolvable:$true] %s2334
      %2340 = dma.vmem_to_hbm [thread:$0]  %s2333, 512, %s2335, [#allocation5], 128, 128, 8
    $region65: #{tpu_custom_call.1} parent=1 // pred_fallthru
      _
    // Predicated region
    $region66: #{tpu_custom_call.1} parent=1 // pred_check
      _
    $region67: #{tpu_custom_call.1} parent=1 // pred_check_branch
      %2342 = sbr.rel (0) target = $region69
    $region68: #{tpu_custom_call.1} parent=1 // pred_region
      %2344 = dma.done [#allocation5], 512
    $region69: #{tpu_custom_call.1} parent=1 // pred_fallthru
      _
    %2345 = vsyncpa [#allocation4], 1
    %2346 = vsyncpa [#allocation7], 1
    %2347 = vsyncpa [#allocation10], 1
    %2348 = vsyncpa [#allocation5], 1

</llo_original>
